<compile_context>
chip_gen: v7x
topology: tpu7x:2x2x1
jax: 0.10.0
libtpu: 0.0.40
codegen_flags: <defaults>
</compile_context>

<pallas_src>
import jax
import jax.numpy as jnp
from jax.experimental import pallas as pl
from jax.experimental.pallas import tpu as pltpu

_LANE = 128


def _make_nb_ae_kernel(latent_dim):
    """Kernel closure; latent_dim is the true (unpadded) z width."""

    def kernel(x_ref,
               w1_ref, b1_ref,
               w2_ref, b2_ref,
               w3_ref, b3_ref,
               w4_ref, b4_ref,
               rate_ref, z_ref):
        x = x_ref[...]

        # layer1: Linear (BN folded) -> ReLU
        h1 = jnp.dot(x, w1_ref[...], preferred_element_type=jnp.float32) + b1_ref[...]
        h1 = jnp.maximum(h1, 0.0)

        # layer2: Linear (BN folded) -> ReLU   (z, lane-padded only internally)
        z = jnp.dot(h1, w2_ref[...], preferred_element_type=jnp.float32) + b2_ref[...]
        z = jnp.maximum(z, 0.0)

        # layer3: Linear -> ReLU
        h3 = jnp.dot(z, w3_ref[...], preferred_element_type=jnp.float32) + b3_ref[...]
        h3 = jnp.maximum(h3, 0.0)

        # layer4: Linear -> exp (rate_scaled)
        h4 = jnp.dot(h3, w4_ref[...], preferred_element_type=jnp.float32) + b4_ref[...]
        rate_ref[...] = jnp.exp(h4).astype(rate_ref.dtype)

        # Store only the true latent columns (padded columns are exactly 0).
        z_ref[...] = z[:, :latent_dim].astype(z_ref.dtype)

    return kernel


def _pick_batch_tile(N, batch_tile):
    """Multiple-of-8 tile that divides N when possible, with grid length >= 2."""
    if N <= 16:
        return N                                   # single full block; any N is legal
    cap = min(batch_tile, (N + 1) // 2)            # grid >= 2 steps (v7x megacore)
    cap = max(8, (cap // 8) * 8)                   # sublane-aligned
    bn = cap
    while bn >= 8:                                 # prefer a divisor of N (no tail tile)
        if N % bn == 0:
            return bn
        bn -= 8
    return cap                                     # fallback: partial tail tile (masked)


def new_nb_ae_forward(x, params, *, batch_tile=1024):
    N, D = x.shape
    H = params["w1"].shape[1]
    L = params["w2"].shape[1]

    # ---- param prep (once per call in XLA; cheap relative to the GEMMs) ----
    # Fold eval-mode BatchNorm (scale s, shift t) into the Linear weights/biases.
    w1 = params["w1"] * params["s1"]
    b1 = params["b1"] * params["s1"] + params["t1"]
    w2 = params["w2"] * params["s2"]
    b2 = params["b2"] * params["s2"] + params["t2"]
    w3, b3 = params["w3"], params["b3"]
    w4, b4 = params["w4"], params["b4"]

    # Pad the latent dim to 128 lanes *inside* the kernel only (zero pad is exact:
    # padded z columns are relu(0)=0 and the matching w3 rows are 0). The z HBM
    # output stays at its true width L.
    Lp = ((L + _LANE - 1) // _LANE) * _LANE
    if Lp != L:
        w2 = jnp.pad(w2, ((0, 0), (0, Lp - L)))
        b2 = jnp.pad(b2, ((0, 0), (0, Lp - L)))
        w3 = jnp.pad(w3, ((0, Lp - L), (0, 0)))

    # ---- batch tile selection ----
    bn = _pick_batch_tile(N, int(batch_tile))
    grid = (pl.cdiv(N, bn),)

    # ---- VMEM budget: weights are grid-invariant (single-buffered); only the
    # per-row IO tiles are double-buffered by the pipeline. +50% headroom,
    # capped at 48 MiB so the same config is safe on v7x (64 MiB physical). ----
    f32b = 4
    weight_bytes = (D * H + H * Lp + Lp * H + H * D + 2 * H + Lp + D) * f32b
    io_bytes = bn * (D + D + L) * f32b * 2         # x read + rate/z writes, double-buffered
    vmem_limit = int(min(max(1.5 * (weight_bytes + io_bytes), 4 * 2**20), 48 * 2**20))

    full = lambda shape: pl.BlockSpec(shape, lambda i: (0,) * len(shape))
    row = lambda cols: pl.BlockSpec((bn, cols), lambda i: (i, 0))

    rate, z = pl.pallas_call(
        _make_nb_ae_kernel(L),
        grid=grid,
        in_specs=[
            row(D),                          # x tile
            full((D, H)), full((1, H)),      # layer1 (BN folded)
            full((H, Lp)), full((1, Lp)),    # layer2 (BN folded, lane-padded)
            full((Lp, H)), full((1, H)),     # layer3
            full((H, D)), full((1, D)),      # layer4
        ],
        out_specs=[
            row(D),                          # rate_scaled tile
            row(L),                          # z tile (true width; no padded writeback)
        ],
        out_shape=[
            jax.ShapeDtypeStruct((N, D), jnp.float32),
            jax.ShapeDtypeStruct((N, L), jnp.float32),
        ],
        compiler_params=pltpu.CompilerParams(
            dimension_semantics=("parallel",),
            vmem_limit_bytes=vmem_limit),
    )(x, w1, b1, w2, b2, w3, b3, w4, b4)

    # logits does not depend on x: compute its exp outside the kernel, once.
    disp = jnp.exp(params["logits"][0])

    # Matches PyTorch: (rate_scaled, self.logits.exp(), None, z)
    return rate, disp, None, z


def init_params(key, input_dim, hidden_dim, latent_dim):
    ks = jax.random.split(key, 12)
    eps = 1e-5

    def linear(kw, kb, fin, fout):
        bound = 1.0 / jnp.sqrt(fin)
        w = jax.random.uniform(kw, (fin, fout), jnp.float32, -bound, bound)
        b = jax.random.uniform(kb, (1, fout), jnp.float32, -bound, bound)
        return w, b

    def bn_fold(kg, kb, feat):
        gamma = 1.0 + 0.1 * jax.random.normal(kg, (1, feat), jnp.float32)
        beta = 0.1 * jax.random.normal(kb, (1, feat), jnp.float32)
        running_mean = jnp.zeros((1, feat), jnp.float32)
        running_var = jnp.ones((1, feat), jnp.float32)
        scale = gamma / jnp.sqrt(running_var + eps)
        shift = beta - running_mean * scale
        return scale, shift

    w1, b1 = linear(ks[0], ks[1], input_dim, hidden_dim)
    s1, t1 = bn_fold(ks[2], ks[3], hidden_dim)
    w2, b2 = linear(ks[4], ks[5], hidden_dim, latent_dim)
    s2, t2 = bn_fold(ks[6], ks[7], latent_dim)
    w3, b3 = linear(ks[8], ks[9], latent_dim, hidden_dim)
    w4, b4 = linear(ks[10], ks[11], hidden_dim, input_dim)
    logits = jax.random.normal(jax.random.fold_in(key, 99),
                               (1, input_dim), jnp.float32)
    return dict(w1=w1, b1=b1, s1=s1, t1=t1,
                w2=w2, b2=b2, s2=s2, t2=t2,
                w3=w3, b3=b3, w4=w4, b4=b4, logits=logits)


def _reference(x, p):
    relu = lambda a: jnp.maximum(a, 0.0)
    h1 = relu((x @ p["w1"] + p["b1"]) * p["s1"] + p["t1"])
    z = relu((h1 @ p["w2"] + p["b2"]) * p["s2"] + p["t2"])
    h3 = relu(z @ p["w3"] + p["b3"])
    rate = jnp.exp(h3 @ p["w4"] + p["b4"])
    return rate, jnp.exp(p["logits"][0]), None, z


if __name__ == "__main__":
    input_dim, hidden_dim, latent_dim = 16, 32, 8
    batch = 512  # tile picker yields bn=256, grid=(2,) -> pipelines and feeds both v7x TCs

    key = jax.random.PRNGKey(0)
    kx, kp = jax.random.split(key)
    x = jax.random.normal(kx, (batch, input_dim), jnp.float32)
    params = init_params(kp, input_dim, hidden_dim, latent_dim)

    rate, disp, none_out, z = new_nb_ae_forward(x, params)
    jax.block_until_ready((rate, disp, z))

    r_rate, r_disp, _, r_z = _reference(x, params)
    assert none_out is None
    assert rate.shape == (batch, input_dim) and z.shape == (batch, latent_dim)
    # Folded-BN formulation differs from the reference only by f32 rounding.
    assert jnp.allclose(rate, r_rate, rtol=2e-4, atol=1e-5)
    assert jnp.allclose(disp, r_disp, rtol=1e-5, atol=1e-6)
    assert jnp.allclose(z, r_z, rtol=2e-4, atol=1e-5)

    print("KERNEL_OK")
</pallas_src>

<mosaic_0001>
module attributes {stable_mosaic.version = 11 : i64} {
  func.func @kernel(%arg0: i32, %arg1: memref<256x16xf32, #tpu.memory_space<vmem>>, %arg2: memref<16x32xf32, #tpu.memory_space<vmem>>, %arg3: memref<1x32xf32, #tpu.memory_space<vmem>>, %arg4: memref<32x128xf32, #tpu.memory_space<vmem>>, %arg5: memref<1x128xf32, #tpu.memory_space<vmem>>, %arg6: memref<128x32xf32, #tpu.memory_space<vmem>>, %arg7: memref<1x32xf32, #tpu.memory_space<vmem>>, %arg8: memref<32x16xf32, #tpu.memory_space<vmem>>, %arg9: memref<1x16xf32, #tpu.memory_space<vmem>>, %arg10: memref<256x16xf32, #tpu.memory_space<vmem>>, %arg11: memref<256x8xf32, #tpu.memory_space<vmem>>) attributes {dimension_semantics = [#tpu.dimension_semantics<parallel>], iteration_bounds = array<i64: 2>, scalar_prefetch = 0 : i64, scratch_operands = 0 : i64, tpu.core_type = #tpu.core_type<tc>, window_params = [{transform_indices = @transform_0, window_bounds = array<i64: 256, 16>}, {pipeline_mode = #tpu.pipeline_mode<synchronous>, transform_indices = @transform_1, window_bounds = array<i64: 16, 32>}, {pipeline_mode = #tpu.pipeline_mode<synchronous>, transform_indices = @transform_2, window_bounds = array<i64: 1, 32>}, {pipeline_mode = #tpu.pipeline_mode<synchronous>, transform_indices = @transform_3, window_bounds = array<i64: 32, 128>}, {pipeline_mode = #tpu.pipeline_mode<synchronous>, transform_indices = @transform_4, window_bounds = array<i64: 1, 128>}, {pipeline_mode = #tpu.pipeline_mode<synchronous>, transform_indices = @transform_5, window_bounds = array<i64: 128, 32>}, {pipeline_mode = #tpu.pipeline_mode<synchronous>, transform_indices = @transform_6, window_bounds = array<i64: 1, 32>}, {pipeline_mode = #tpu.pipeline_mode<synchronous>, transform_indices = @transform_7, window_bounds = array<i64: 32, 16>}, {pipeline_mode = #tpu.pipeline_mode<synchronous>, transform_indices = @transform_8, window_bounds = array<i64: 1, 16>}, {transform_indices = @transform_9, window_bounds = array<i64: 256, 16>}, {transform_indices = @transform_10, window_bounds = array<i64: 256, 8>}]} {
    %c0 = arith.constant 0 : index
    %c0_0 = arith.constant 0 : index
    %0 = vector.load %arg1[%c0, %c0_0] : memref<256x16xf32, #tpu.memory_space<vmem>>, vector<256x16xf32>
    %c0_1 = arith.constant 0 : index
    %c0_2 = arith.constant 0 : index
    %1 = vector.load %arg2[%c0_1, %c0_2] : memref<16x32xf32, #tpu.memory_space<vmem>>, vector<16x32xf32>
    %cst = arith.constant dense<0.000000e+00> : vector<256x32xf32>
    %2 = tpu.matmul %0, %1, %cst {dimension_numbers = #tpu.dot_dimension_numbers<[1], [0], [0], [1], [0, 0, 1, 1], [], []>} : vector<256x16xf32>, vector<16x32xf32>, vector<256x32xf32> -> vector<256x32xf32>
    %c0_3 = arith.constant 0 : index
    %c0_4 = arith.constant 0 : index
    %3 = vector.load %arg3[%c0_3, %c0_4] : memref<1x32xf32, #tpu.memory_space<vmem>>, vector<1x32xf32>
    %4 = vector.broadcast %3 : vector<1x32xf32> to vector<256x32xf32>
    %5 = arith.addf %2, %4 : vector<256x32xf32>
    %cst_5 = arith.constant 0.000000e+00 : f32
    %6 = vector.broadcast %cst_5 : f32 to vector<256x32xf32>
    %7 = arith.maximumf %5, %6 : vector<256x32xf32>
    %c0_6 = arith.constant 0 : index
    %c0_7 = arith.constant 0 : index
    %8 = vector.load %arg4[%c0_6, %c0_7] : memref<32x128xf32, #tpu.memory_space<vmem>>, vector<32x128xf32>
    %cst_8 = arith.constant dense<0.000000e+00> : vector<256x128xf32>
    %9 = tpu.matmul %7, %8, %cst_8 {dimension_numbers = #tpu.dot_dimension_numbers<[1], [0], [0], [1], [0, 0, 1, 1], [], []>} : vector<256x32xf32>, vector<32x128xf32>, vector<256x128xf32> -> vector<256x128xf32>
    %c0_9 = arith.constant 0 : index
    %c0_10 = arith.constant 0 : index
    %10 = vector.load %arg5[%c0_9, %c0_10] : memref<1x128xf32, #tpu.memory_space<vmem>>, vector<1x128xf32>
    %11 = vector.broadcast %10 : vector<1x128xf32> to vector<256x128xf32>
    %12 = arith.addf %9, %11 : vector<256x128xf32>
    %cst_11 = arith.constant 0.000000e+00 : f32
    %13 = vector.broadcast %cst_11 : f32 to vector<256x128xf32>
    %14 = arith.maximumf %12, %13 : vector<256x128xf32>
    %c0_12 = arith.constant 0 : index
    %c0_13 = arith.constant 0 : index
    %15 = vector.load %arg6[%c0_12, %c0_13] : memref<128x32xf32, #tpu.memory_space<vmem>>, vector<128x32xf32>
    %cst_14 = arith.constant dense<0.000000e+00> : vector<256x32xf32>
    %16 = tpu.matmul %14, %15, %cst_14 {dimension_numbers = #tpu.dot_dimension_numbers<[1], [0], [0], [1], [0, 0, 1, 1], [], []>} : vector<256x128xf32>, vector<128x32xf32>, vector<256x32xf32> -> vector<256x32xf32>
    %c0_15 = arith.constant 0 : index
    %c0_16 = arith.constant 0 : index
    %17 = vector.load %arg7[%c0_15, %c0_16] : memref<1x32xf32, #tpu.memory_space<vmem>>, vector<1x32xf32>
    %18 = vector.broadcast %17 : vector<1x32xf32> to vector<256x32xf32>
    %19 = arith.addf %16, %18 : vector<256x32xf32>
    %cst_17 = arith.constant 0.000000e+00 : f32
    %20 = vector.broadcast %cst_17 : f32 to vector<256x32xf32>
    %21 = arith.maximumf %19, %20 : vector<256x32xf32>
    %c0_18 = arith.constant 0 : index
    %c0_19 = arith.constant 0 : index
    %22 = vector.load %arg8[%c0_18, %c0_19] : memref<32x16xf32, #tpu.memory_space<vmem>>, vector<32x16xf32>
    %cst_20 = arith.constant dense<0.000000e+00> : vector<256x16xf32>
    %23 = tpu.matmul %21, %22, %cst_20 {dimension_numbers = #tpu.dot_dimension_numbers<[1], [0], [0], [1], [0, 0, 1, 1], [], []>} : vector<256x32xf32>, vector<32x16xf32>, vector<256x16xf32> -> vector<256x16xf32>
    %c0_21 = arith.constant 0 : index
    %c0_22 = arith.constant 0 : index
    %24 = vector.load %arg9[%c0_21, %c0_22] : memref<1x16xf32, #tpu.memory_space<vmem>>, vector<1x16xf32>
    %25 = vector.broadcast %24 : vector<1x16xf32> to vector<256x16xf32>
    %26 = arith.addf %23, %25 : vector<256x16xf32>
    %27 = math.exp %26 : vector<256x16xf32>
    %c0_23 = arith.constant 0 : index
    %c0_24 = arith.constant 0 : index
    %28 = vector.load %arg10[%c0_23, %c0_24] : memref<256x16xf32, #tpu.memory_space<vmem>>, vector<256x16xf32>
    tpu.vector_store %arg10[%c0_23, %c0_24], %27 {strides = array<i32>} : memref<256x16xf32, #tpu.memory_space<vmem>>, vector<256x16xf32>,
    %29 = vector.extract_strided_slice %14 {offsets = [0, 0], sizes = [256, 8], strides = [1, 1]} : vector<256x128xf32> to vector<256x8xf32>
    %c0_25 = arith.constant 0 : index
    %c0_26 = arith.constant 0 : index
    %30 = vector.load %arg11[%c0_25, %c0_26] : memref<256x8xf32, #tpu.memory_space<vmem>>, vector<256x8xf32>
    tpu.vector_store %arg11[%c0_25, %c0_26], %29 {strides = array<i32>} : memref<256x8xf32, #tpu.memory_space<vmem>>, vector<256x8xf32>,
    return
  }
  func.func @transform_0(%arg0: i32) -> (i32, i32) {
    %c0_i32 = arith.constant 0 : i32
    %c0_i32_0 = arith.constant 0 : i32
    return %arg0, %c0_i32 : i32, i32
  }
  func.func @transform_1(%arg0: i32) -> (i32, i32) {
    %c0_i32 = arith.constant 0 : i32
    %c0_i32_0 = arith.constant 0 : i32
    %c0_i32_1 = arith.constant 0 : i32
    return %c0_i32, %c0_i32_0 : i32, i32
  }
  func.func @transform_2(%arg0: i32) -> (i32, i32) {
    %c0_i32 = arith.constant 0 : i32
    %c0_i32_0 = arith.constant 0 : i32
    %c0_i32_1 = arith.constant 0 : i32
    return %c0_i32, %c0_i32_0 : i32, i32
  }
  func.func @transform_3(%arg0: i32) -> (i32, i32) {
    %c0_i32 = arith.constant 0 : i32
    %c0_i32_0 = arith.constant 0 : i32
    %c0_i32_1 = arith.constant 0 : i32
    return %c0_i32, %c0_i32_0 : i32, i32
  }
  func.func @transform_4(%arg0: i32) -> (i32, i32) {
    %c0_i32 = arith.constant 0 : i32
    %c0_i32_0 = arith.constant 0 : i32
    %c0_i32_1 = arith.constant 0 : i32
    return %c0_i32, %c0_i32_0 : i32, i32
  }
  func.func @transform_5(%arg0: i32) -> (i32, i32) {
    %c0_i32 = arith.constant 0 : i32
    %c0_i32_0 = arith.constant 0 : i32
    %c0_i32_1 = arith.constant 0 : i32
    return %c0_i32, %c0_i32_0 : i32, i32
  }
  func.func @transform_6(%arg0: i32) -> (i32, i32) {
    %c0_i32 = arith.constant 0 : i32
    %c0_i32_0 = arith.constant 0 : i32
    %c0_i32_1 = arith.constant 0 : i32
    return %c0_i32, %c0_i32_0 : i32, i32
  }
  func.func @transform_7(%arg0: i32) -> (i32, i32) {
    %c0_i32 = arith.constant 0 : i32
    %c0_i32_0 = arith.constant 0 : i32
    %c0_i32_1 = arith.constant 0 : i32
    return %c0_i32, %c0_i32_0 : i32, i32
  }
  func.func @transform_8(%arg0: i32) -> (i32, i32) {
    %c0_i32 = arith.constant 0 : i32
    %c0_i32_0 = arith.constant 0 : i32
    %c0_i32_1 = arith.constant 0 : i32
    return %c0_i32, %c0_i32_0 : i32, i32
  }
  func.func @transform_9(%arg0: i32) -> (i32, i32) {
    %c0_i32 = arith.constant 0 : i32
    %c0_i32_0 = arith.constant 0 : i32
    return %arg0, %c0_i32 : i32, i32
  }
  func.func @transform_10(%arg0: i32) -> (i32, i32) {
    %c0_i32 = arith.constant 0 : i32
    %c0_i32_0 = arith.constant 0 : i32
    return %arg0, %c0_i32 : i32, i32
  }
}

</mosaic_0001>

<llo_original>
// kernel: tpu_custom_call.1
$region0: #{tpu_custom_call.1}
  #allocation0 [shape = 'u32[]', space=smem, size = 0x4, offset = 0x4, fixed_abs, tag = 'smem constant byte address 0x4 - core index']
  #allocation1 [shape = 'u32[144,128]{1,0:T(1,128)}', space=vmem, size = 0x12000, scoped, tag = 'internal scratch']
  %s0 = inlined_call_operand.vmem [shape: f32[512,16], index: 0, kind: input, shape index: {}]
  %s1 = inlined_call_operand.vmem [shape: f32[16,32], index: 1, kind: input, shape index: {}]
  %s2 = inlined_call_operand.vmem [shape: f32[1,32], index: 2, kind: input, shape index: {}]
  %s3 = inlined_call_operand.vmem [shape: f32[32,128], index: 3, kind: input, shape index: {}]
  %s4 = inlined_call_operand.vmem [shape: f32[1,128], index: 4, kind: input, shape index: {}]
  %s5 = inlined_call_operand.vmem [shape: f32[128,32], index: 5, kind: input, shape index: {}]
  %s6 = inlined_call_operand.vmem [shape: f32[1,32], index: 6, kind: input, shape index: {}]
  %s7 = inlined_call_operand.vmem [shape: f32[32,16], index: 7, kind: input, shape index: {}]
  %s8 = inlined_call_operand.vmem [shape: f32[1,16], index: 8, kind: input, shape index: {}]
  %s9 = inlined_call_operand.vmem [shape: f32[512,16], index: 9, kind: output, shape index: {0}]
  %s10 = inlined_call_operand.vmem [shape: f32[512,8], index: 10, kind: output, shape index: {1}]
  %11 = xla_tuple %s9, %s10
  %s12 = sld [smem:[#allocation0]]
  $region77: #{tpu_custom_call.1} parent=0
    _
  %s14 = ssub.s32 1, %s12
  %s15 = scalar_select 0, %s14, %s12
  loop: start=0, step=1, limit=4
  $region2: #{tpu_custom_call.1} parent=0 // loop_pre_header
    _
  $region3: #{tpu_custom_call.1} parent=0 // loop_header
    %s17 = sphi 0, %s21
    %p18 = scmp.ge.s32.totalorder %s17, 4
    %s27 = sphi 0, %s29
    %s30 = sphi 0, %s27
    %s31 = sphi 0, %s30
    %s47 = sphi 0, %s31
    %s51 = sphi 0, %s51
    %s53 = sphi 0, %s51
    %s54 = sphi 0, %s53
    %s68 = sphi 0, %s54
    %s72 = sphi 0, %s72
    %s74 = sphi 0, %s72
    %s75 = sphi 0, %s74
    %s89 = sphi 0, %s75
    %s93 = sphi 0, %s93
    %s95 = sphi 0, %s93
    %s96 = sphi 0, %s95
    %s110 = sphi 0, %s96
    %s114 = sphi 0, %s114
    %s116 = sphi 0, %s114
    %s117 = sphi 0, %s116
    %s131 = sphi 0, %s117
    %s135 = sphi 0, %s135
    %s137 = sphi 0, %s135
    %s138 = sphi 0, %s137
    %s152 = sphi 0, %s138
    %s156 = sphi 0, %s156
    %s158 = sphi 0, %s156
    %s159 = sphi 0, %s158
    %s173 = sphi 0, %s159
    %s177 = sphi 0, %s177
    %s179 = sphi 0, %s177
    %s180 = sphi 0, %s179
    %s194 = sphi 0, %s180
    %s198 = sphi 0, %s198
    %s200 = sphi 0, %s198
    %s201 = sphi 0, %s200
    %s215 = sphi 0, %s201
    %s221 = sphi 0, %s223
    %s224 = sphi 0, %s221
    %s225 = sphi 0, %s224
    %s241 = sphi 0, %s225
    %s247 = sphi 0, %s249
    %s250 = sphi 0, %s247
    %s251 = sphi 0, %s250
    %s267 = sphi 0, %s251
  $region4: #{tpu_custom_call.1} parent=0 // loop_header_branch
    %20 = sbr.rel (%p18) target = $region8
  $region5: #{tpu_custom_call.1} parent=0 // loop_body
    %s22 = ssub.s32 %s17, 1
    %s23 = ssub.s32 %s17, 2
    %s24 = sadd.s32 %s17, 1
    %s25 = ssub.s32 %s17, %s24
    %p26 = scmp.eq.s32.totalorder %s25, 0
    %s28 = sadd.s32 %s27, 1
    %s29 = scalar_select %p26, %s27, %s28
    %p32 = pneg %p26
    %p33 = scmp.eq.s32.totalorder %s17, 1
    %p34 = por %p32, %p33
    %p35 = scmp.ne.s32.totalorder %s27, %s30
    %p36 = scmp.eq.s32.totalorder %s17, 0
    %p37 = por %p35, %p36
    %p38 = scmp.ne.s32.totalorder %s27, %s30
    %p39 = scmp.eq.s32.totalorder %s22, 1
    %p40 = por %p38, %p39
    %p41 = scmp.ne.s32.totalorder %s30, %s31
    %p42 = scmp.eq.s32.totalorder %s22, 0
    %p43 = por %p41, %p42
    %p44 = scmp.ne.s32.totalorder %s30, %s31
    %p45 = scmp.eq.s32.totalorder %s23, 1
    %p46 = por %p44, %p45
    %p48 = scmp.ne.s32.totalorder %s31, %s47
    %p49 = scmp.eq.s32.totalorder %s23, 0
    %p50 = por %p48, %p49
    %s52 = sadd.s32 %s51, 1
    %p55 = scmp.eq.s32.totalorder %s17, 1
    %p56 = scmp.ne.s32.totalorder %s51, %s53
    %p57 = scmp.eq.s32.totalorder %s17, 0
    %p58 = por %p56, %p57
    %p59 = scmp.ne.s32.totalorder %s51, %s53
    %p60 = scmp.eq.s32.totalorder %s22, 1
    %p61 = por %p59, %p60
    %p62 = scmp.ne.s32.totalorder %s53, %s54
    %p63 = scmp.eq.s32.totalorder %s22, 0
    %p64 = por %p62, %p63
    %p65 = scmp.ne.s32.totalorder %s53, %s54
    %p66 = scmp.eq.s32.totalorder %s23, 1
    %p67 = por %p65, %p66
    %p69 = scmp.ne.s32.totalorder %s54, %s68
    %p70 = scmp.eq.s32.totalorder %s23, 0
    %p71 = por %p69, %p70
    %s73 = sadd.s32 %s72, 1
    %p76 = scmp.eq.s32.totalorder %s17, 1
    %p77 = scmp.ne.s32.totalorder %s72, %s74
    %p78 = scmp.eq.s32.totalorder %s17, 0
    %p79 = por %p77, %p78
    %p80 = scmp.ne.s32.totalorder %s72, %s74
    %p81 = scmp.eq.s32.totalorder %s22, 1
    %p82 = por %p80, %p81
    %p83 = scmp.ne.s32.totalorder %s74, %s75
    %p84 = scmp.eq.s32.totalorder %s22, 0
    %p85 = por %p83, %p84
    %p86 = scmp.ne.s32.totalorder %s74, %s75
    %p87 = scmp.eq.s32.totalorder %s23, 1
    %p88 = por %p86, %p87
    %p90 = scmp.ne.s32.totalorder %s75, %s89
    %p91 = scmp.eq.s32.totalorder %s23, 0
    %p92 = por %p90, %p91
    %s94 = sadd.s32 %s93, 1
    %p97 = scmp.eq.s32.totalorder %s17, 1
    %p98 = scmp.ne.s32.totalorder %s93, %s95
    %p99 = scmp.eq.s32.totalorder %s17, 0
    %p100 = por %p98, %p99
    %p101 = scmp.ne.s32.totalorder %s93, %s95
    %p102 = scmp.eq.s32.totalorder %s22, 1
    %p103 = por %p101, %p102
    %p104 = scmp.ne.s32.totalorder %s95, %s96
    %p105 = scmp.eq.s32.totalorder %s22, 0
    %p106 = por %p104, %p105
    %p107 = scmp.ne.s32.totalorder %s95, %s96
    %p108 = scmp.eq.s32.totalorder %s23, 1
    %p109 = por %p107, %p108
    %p111 = scmp.ne.s32.totalorder %s96, %s110
    %p112 = scmp.eq.s32.totalorder %s23, 0
    %p113 = por %p111, %p112
    %s115 = sadd.s32 %s114, 1
    %p118 = scmp.eq.s32.totalorder %s17, 1
    %p119 = scmp.ne.s32.totalorder %s114, %s116
    %p120 = scmp.eq.s32.totalorder %s17, 0
    %p121 = por %p119, %p120
    %p122 = scmp.ne.s32.totalorder %s114, %s116
    %p123 = scmp.eq.s32.totalorder %s22, 1
    %p124 = por %p122, %p123
    %p125 = scmp.ne.s32.totalorder %s116, %s117
    %p126 = scmp.eq.s32.totalorder %s22, 0
    %p127 = por %p125, %p126
    %p128 = scmp.ne.s32.totalorder %s116, %s117
    %p129 = scmp.eq.s32.totalorder %s23, 1
    %p130 = por %p128, %p129
    %p132 = scmp.ne.s32.totalorder %s117, %s131
    %p133 = scmp.eq.s32.totalorder %s23, 0
    %p134 = por %p132, %p133
    %s136 = sadd.s32 %s135, 1
    %p139 = scmp.eq.s32.totalorder %s17, 1
    %p140 = scmp.ne.s32.totalorder %s135, %s137
    %p141 = scmp.eq.s32.totalorder %s17, 0
    %p142 = por %p140, %p141
    %p143 = scmp.ne.s32.totalorder %s135, %s137
    %p144 = scmp.eq.s32.totalorder %s22, 1
    %p145 = por %p143, %p144
    %p146 = scmp.ne.s32.totalorder %s137, %s138
    %p147 = scmp.eq.s32.totalorder %s22, 0
    %p148 = por %p146, %p147
    %p149 = scmp.ne.s32.totalorder %s137, %s138
    %p150 = scmp.eq.s32.totalorder %s23, 1
    %p151 = por %p149, %p150
    %p153 = scmp.ne.s32.totalorder %s138, %s152
    %p154 = scmp.eq.s32.totalorder %s23, 0
    %p155 = por %p153, %p154
    %s157 = sadd.s32 %s156, 1
    %p160 = scmp.eq.s32.totalorder %s17, 1
    %p161 = scmp.ne.s32.totalorder %s156, %s158
    %p162 = scmp.eq.s32.totalorder %s17, 0
    %p163 = por %p161, %p162
    %p164 = scmp.ne.s32.totalorder %s156, %s158
    %p165 = scmp.eq.s32.totalorder %s22, 1
    %p166 = por %p164, %p165
    %p167 = scmp.ne.s32.totalorder %s158, %s159
    %p168 = scmp.eq.s32.totalorder %s22, 0
    %p169 = por %p167, %p168
    %p170 = scmp.ne.s32.totalorder %s158, %s159
    %p171 = scmp.eq.s32.totalorder %s23, 1
    %p172 = por %p170, %p171
    %p174 = scmp.ne.s32.totalorder %s159, %s173
    %p175 = scmp.eq.s32.totalorder %s23, 0
    %p176 = por %p174, %p175
    %s178 = sadd.s32 %s177, 1
    %p181 = scmp.eq.s32.totalorder %s17, 1
    %p182 = scmp.ne.s32.totalorder %s177, %s179
    %p183 = scmp.eq.s32.totalorder %s17, 0
    %p184 = por %p182, %p183
    %p185 = scmp.ne.s32.totalorder %s177, %s179
    %p186 = scmp.eq.s32.totalorder %s22, 1
    %p187 = por %p185, %p186
    %p188 = scmp.ne.s32.totalorder %s179, %s180
    %p189 = scmp.eq.s32.totalorder %s22, 0
    %p190 = por %p188, %p189
    %p191 = scmp.ne.s32.totalorder %s179, %s180
    %p192 = scmp.eq.s32.totalorder %s23, 1
    %p193 = por %p191, %p192
    %p195 = scmp.ne.s32.totalorder %s180, %s194
    %p196 = scmp.eq.s32.totalorder %s23, 0
    %p197 = por %p195, %p196
    %s199 = sadd.s32 %s198, 1
    %p202 = scmp.eq.s32.totalorder %s17, 1
    %p203 = scmp.ne.s32.totalorder %s198, %s200
    %p204 = scmp.eq.s32.totalorder %s17, 0
    %p205 = por %p203, %p204
    %p206 = scmp.ne.s32.totalorder %s198, %s200
    %p207 = scmp.eq.s32.totalorder %s22, 1
    %p208 = por %p206, %p207
    %p209 = scmp.ne.s32.totalorder %s200, %s201
    %p210 = scmp.eq.s32.totalorder %s22, 0
    %p211 = por %p209, %p210
    %p212 = scmp.ne.s32.totalorder %s200, %s201
    %p213 = scmp.eq.s32.totalorder %s23, 1
    %p214 = por %p212, %p213
    %p216 = scmp.ne.s32.totalorder %s201, %s215
    %p217 = scmp.eq.s32.totalorder %s23, 0
    %p218 = por %p216, %p217
    %s219 = ssub.s32 %s17, %s24
    %p220 = scmp.eq.s32.totalorder %s219, 0
    %s222 = sadd.s32 %s221, 1
    %s223 = scalar_select %p220, %s221, %s222
    %p226 = pneg %p220
    %p227 = scmp.eq.s32.totalorder %s17, 1
    %p228 = por %p226, %p227
    %p229 = scmp.ne.s32.totalorder %s221, %s224
    %p230 = scmp.eq.s32.totalorder %s17, 0
    %p231 = por %p229, %p230
    %p232 = scmp.ne.s32.totalorder %s221, %s224
    %p233 = scmp.eq.s32.totalorder %s22, 1
    %p234 = por %p232, %p233
    %p235 = scmp.ne.s32.totalorder %s224, %s225
    %p236 = scmp.eq.s32.totalorder %s22, 0
    %p237 = por %p235, %p236
    %p238 = scmp.ne.s32.totalorder %s224, %s225
    %p239 = scmp.eq.s32.totalorder %s23, 1
    %p240 = por %p238, %p239
    %p242 = scmp.ne.s32.totalorder %s225, %s241
    %p243 = scmp.eq.s32.totalorder %s23, 0
    %p244 = por %p242, %p243
    %s245 = ssub.s32 %s17, %s24
    %p246 = scmp.eq.s32.totalorder %s245, 0
    %s248 = sadd.s32 %s247, 1
    %s249 = scalar_select %p246, %s247, %s248
    %p252 = pneg %p246
    %p253 = scmp.eq.s32.totalorder %s17, 1
    %p254 = por %p252, %p253
    %p255 = scmp.ne.s32.totalorder %s247, %s250
    %p256 = scmp.eq.s32.totalorder %s17, 0
    %p257 = por %p255, %p256
    %p258 = scmp.ne.s32.totalorder %s247, %s250
    %p259 = scmp.eq.s32.totalorder %s22, 1
    %p260 = por %p258, %p259
    %p261 = scmp.ne.s32.totalorder %s250, %s251
    %p262 = scmp.eq.s32.totalorder %s22, 0
    %p263 = por %p261, %p262
    %p264 = scmp.ne.s32.totalorder %s250, %s251
    %p265 = scmp.eq.s32.totalorder %s23, 1
    %p266 = por %p264, %p265
    %p268 = scmp.ne.s32.totalorder %s251, %s267
    %p269 = scmp.eq.s32.totalorder %s23, 0
    %p270 = por %p268, %p269
    %p271 = scmp.le.s32.totalorder 1, %s17
    %p272 = scmp.lt.s32.totalorder %s17, 3
    %p273 = pnand %p271, %p272
    %p274 = pneg %p273
    // Predicated region
    $region9: #{tpu_custom_call.1} parent=5 // pred_check
      _
    $region10: #{tpu_custom_call.1} parent=5 // pred_check_branch
      %276 = sbr.rel (%p273) target = $region12
    $region11: #{tpu_custom_call.1} parent=5 // pred_region
      %s277 = ssub.s32 %s17, 1
      // Predicated region
      $region13: #{tpu_custom_call.1} parent=11 // pred_check
        %p278 = pneg %p64
      $region14: #{tpu_custom_call.1} parent=11 // pred_check_branch
        %280 = sbr.rel (%p278) target = $region16
      $region15: #{tpu_custom_call.1} parent=11 // pred_region
        _
      $region16: #{tpu_custom_call.1} parent=11 // pred_fallthru
        _
      // Predicated region
      $region17: #{tpu_custom_call.1} parent=11 // pred_check
        %p281 = pneg %p85
      $region18: #{tpu_custom_call.1} parent=11 // pred_check_branch
        %283 = sbr.rel (%p281) target = $region20
      $region19: #{tpu_custom_call.1} parent=11 // pred_region
        _
      $region20: #{tpu_custom_call.1} parent=11 // pred_fallthru
        _
      // Predicated region
      $region21: #{tpu_custom_call.1} parent=11 // pred_check
        %p284 = pneg %p106
      $region22: #{tpu_custom_call.1} parent=11 // pred_check_branch
        %286 = sbr.rel (%p284) target = $region24
      $region23: #{tpu_custom_call.1} parent=11 // pred_region
        _
      $region24: #{tpu_custom_call.1} parent=11 // pred_fallthru
        _
      // Predicated region
      $region25: #{tpu_custom_call.1} parent=11 // pred_check
        %p287 = pneg %p127
      $region26: #{tpu_custom_call.1} parent=11 // pred_check_branch
        %289 = sbr.rel (%p287) target = $region28
      $region27: #{tpu_custom_call.1} parent=11 // pred_region
        _
      $region28: #{tpu_custom_call.1} parent=11 // pred_fallthru
        _
      // Predicated region
      $region29: #{tpu_custom_call.1} parent=11 // pred_check
        %p290 = pneg %p148
      $region30: #{tpu_custom_call.1} parent=11 // pred_check_branch
        %292 = sbr.rel (%p290) target = $region32
      $region31: #{tpu_custom_call.1} parent=11 // pred_region
        _
      $region32: #{tpu_custom_call.1} parent=11 // pred_fallthru
        _
      // Predicated region
      $region33: #{tpu_custom_call.1} parent=11 // pred_check
        %p293 = pneg %p169
      $region34: #{tpu_custom_call.1} parent=11 // pred_check_branch
        %295 = sbr.rel (%p293) target = $region36
      $region35: #{tpu_custom_call.1} parent=11 // pred_region
        _
      $region36: #{tpu_custom_call.1} parent=11 // pred_fallthru
        _
      // Predicated region
      $region37: #{tpu_custom_call.1} parent=11 // pred_check
        %p296 = pneg %p190
      $region38: #{tpu_custom_call.1} parent=11 // pred_check_branch
        %298 = sbr.rel (%p296) target = $region40
      $region39: #{tpu_custom_call.1} parent=11 // pred_region
        _
      $region40: #{tpu_custom_call.1} parent=11 // pred_fallthru
        _
      // Predicated region
      $region41: #{tpu_custom_call.1} parent=11 // pred_check
        %p299 = pneg %p211
      $region42: #{tpu_custom_call.1} parent=11 // pred_check_branch
        %301 = sbr.rel (%p299) target = $region44
      $region43: #{tpu_custom_call.1} parent=11 // pred_region
        _
      $region44: #{tpu_custom_call.1} parent=11 // pred_fallthru
        _
    $region12: #{tpu_custom_call.1} parent=5 // pred_fallthru
      _
    %p302 = scmp.lt.s32.totalorder %s17, 2
    // Predicated region
    $region45: #{tpu_custom_call.1} parent=5 // pred_check
      %p303 = pneg %p302
    $region46: #{tpu_custom_call.1} parent=5 // pred_check_branch
      %305 = sbr.rel (%p303) target = $region48
    $region47: #{tpu_custom_call.1} parent=5 // pred_region
      // Predicated region
      $region49: #{tpu_custom_call.1} parent=47 // pred_check
        %p306 = pneg %p37
      $region50: #{tpu_custom_call.1} parent=47 // pred_check_branch
        %308 = sbr.rel (%p306) target = $region52
      $region51: #{tpu_custom_call.1} parent=47 // pred_region
        %s309 = smul.u32 32, %s17
        %p310 = scmp.lt.s32.totalorder %s309, 63
        %s311 = scalar_select %p310, %s309, 63
        %s312 = smul.addr %s311, 8
        %s313 = scalar_lea.vmem %s0, %s312
        %s314 = smul.u32 32, %s17
      $region52: #{tpu_custom_call.1} parent=47 // pred_fallthru
        _
    $region48: #{tpu_custom_call.1} parent=5 // pred_fallthru
      _
    %p315 = scmp.le.s32.totalorder 1, %s17
    %p316 = scmp.lt.s32.totalorder %s17, 3
    %p317 = pnand %p315, %p316
    %p318 = pneg %p317
    // Predicated region
    $region53: #{tpu_custom_call.1} parent=5 // pred_check
      _
    $region54: #{tpu_custom_call.1} parent=5 // pred_check_branch
      %320 = sbr.rel (%p317) target = $region56
    $region55: #{tpu_custom_call.1} parent=5 // pred_region
      %s321 = ssub.s32 %s17, 1
      %s322 = smul.u32 32, %s22
      %p323 = scmp.lt.s32.totalorder %s322, 63
      %s324 = scalar_select %p323, %s322, 63
      %s325 = smul.addr %s324, 8
      %s326 = scalar_lea.vmem %s0, %s325
      %p327 = pneg %p43
      %p328 = pneg %p40
      %p329 = pneg %p64
      %p330 = pneg %p61
      %p331 = pneg %p85
      %p332 = pneg %p82
      %p333 = pneg %p106
      %p334 = pneg %p103
      %p335 = pneg %p127
      %p336 = pneg %p124
      %p337 = pneg %p148
      %p338 = pneg %p145
      %p339 = pneg %p169
      %p340 = pneg %p166
      %p341 = pneg %p190
      %p342 = pneg %p187
      %p343 = pneg %p211
      %p344 = pneg %p208
      %p345 = pneg %p237
      %p346 = pneg %p234
      %s347 = smul.u32 32, %s22
      %p348 = scmp.lt.s32.totalorder %s347, 63
      %s349 = scalar_select %p348, %s347, 63
      %s350 = smul.addr %s349, 8
      %s351 = scalar_lea.vmem %s9, %s350
      %p352 = pneg %p263
      %p353 = pneg %p260
      %s354 = smul.u32 32, %s22
      %p355 = scmp.lt.s32.totalorder %s354, 63
      %s356 = scalar_select %p355, %s354, 63
      %s357 = smul.addr %s356, 8
      %s358 = scalar_lea.vmem %s10, %s357
      %s359 = smul.u32 32, %s22
      %p360 = scmp.lt.s32.totalorder %s359, 63
      %s361 = scalar_select %p360, %s359, 63
      %s362 = smul.addr %s361, 8
      %s363 = scalar_lea.vmem %s0, %s362
      %s364 = smul.u32 32, %s22
      %s365 = smul.u32 32, %s22
      %p366 = scmp.lt.s32.totalorder %s365, 63
      %s367 = scalar_select %p366, %s365, 63
      %s368 = smul.addr %s367, 8
      %s369 = scalar_lea.vmem %s9, %s368
      %s370 = smul.u32 32, %s22
      %s371 = smul.u32 32, %s22
      %p372 = scmp.lt.s32.totalorder %s371, 63
      %s373 = scalar_select %p372, %s371, 63
      %s374 = smul.addr %s373, 8
      %s375 = scalar_lea.vmem %s10, %s374
      %s376 = smul.u32 32, %s22
      %v377 = vld [vmem:[%s363] sm:$0xff]
      %v378 = vld [vmem:[%s363 + $0x8] sm:$0xff]
      %v379 = vld [vmem:[%s363 + $0x10] sm:$0xff]
      %v380 = vld [vmem:[%s363 + $0x18] sm:$0xff]
      %v381 = vld [vmem:[%s363 + $0x20] sm:$0xff]
      %v382 = vld [vmem:[%s363 + $0x28] sm:$0xff]
      %v383 = vld [vmem:[%s363 + $0x30] sm:$0xff]
      %v384 = vld [vmem:[%s363 + $0x38] sm:$0xff]
      %v385 = vld [vmem:[%s363 + $0x40] sm:$0xff]
      %v386 = vld [vmem:[%s363 + $0x48] sm:$0xff]
      %v387 = vld [vmem:[%s363 + $0x50] sm:$0xff]
      %v388 = vld [vmem:[%s363 + $0x58] sm:$0xff]
      %v389 = vld [vmem:[%s363 + $0x60] sm:$0xff]
      %v390 = vld [vmem:[%s363 + $0x68] sm:$0xff]
      %v391 = vld [vmem:[%s363 + $0x70] sm:$0xff]
      %v392 = vld [vmem:[%s363 + $0x78] sm:$0xff]
      %v393 = vld [vmem:[%s363 + $0x80] sm:$0xff]
      %v394 = vld [vmem:[%s363 + $0x88] sm:$0xff]
      %v395 = vld [vmem:[%s363 + $0x90] sm:$0xff]
      %v396 = vld [vmem:[%s363 + $0x98] sm:$0xff]
      %v397 = vld [vmem:[%s363 + $0xa0] sm:$0xff]
      %v398 = vld [vmem:[%s363 + $0xa8] sm:$0xff]
      %v399 = vld [vmem:[%s363 + $0xb0] sm:$0xff]
      %v400 = vld [vmem:[%s363 + $0xb8] sm:$0xff]
      %v401 = vld [vmem:[%s363 + $0xc0] sm:$0xff]
      %v402 = vld [vmem:[%s363 + $0xc8] sm:$0xff]
      %v403 = vld [vmem:[%s363 + $0xd0] sm:$0xff]
      %v404 = vld [vmem:[%s363 + $0xd8] sm:$0xff]
      %v405 = vld [vmem:[%s363 + $0xe0] sm:$0xff]
      %v406 = vld [vmem:[%s363 + $0xe8] sm:$0xff]
      %v407 = vld [vmem:[%s363 + $0xf0] sm:$0xff]
      %v408 = vld [vmem:[%s363 + $0xf8] sm:$0xff]
      %v409 = vld [vmem:[%s1] sm:$0xff]
      %v410 = vld [vmem:[%s1 + $0x8] sm:$0xff]
      %v411 = vld [vmem:[%s2] sm:$0x1]
      %v413 = vlaneseq
      %v414 = vshrl.u32 %v413, 7
      %v415 = vsub.s32 0, %v414
      %v416 = vrot.slane %v411, %v415
      %vm418 = vcmask 130048
      %v420 = vsel %vm418, %v377, 0
      %v423 = vsel %vm418, %v378, 0
      %v426 = vsel %vm418, %v379, 0
      %v429 = vsel %vm418, %v380, 0
      %v432 = vsel %vm418, %v381, 0
      %v435 = vsel %vm418, %v382, 0
      %v438 = vsel %vm418, %v383, 0
      %v441 = vsel %vm418, %v384, 0
      %v444 = vsel %vm418, %v385, 0
      %v447 = vsel %vm418, %v386, 0
      %v450 = vsel %vm418, %v387, 0
      %v453 = vsel %vm418, %v388, 0
      %v456 = vsel %vm418, %v389, 0
      %v459 = vsel %vm418, %v390, 0
      %v462 = vsel %vm418, %v391, 0
      %v465 = vsel %vm418, %v392, 0
      %v468 = vsel %vm418, %v393, 0
      %v471 = vsel %vm418, %v394, 0
      %v474 = vsel %vm418, %v395, 0
      %v477 = vsel %vm418, %v396, 0
      %v480 = vsel %vm418, %v397, 0
      %v483 = vsel %vm418, %v398, 0
      %v486 = vsel %vm418, %v399, 0
      %v489 = vsel %vm418, %v400, 0
      %v492 = vsel %vm418, %v401, 0
      %v495 = vsel %vm418, %v402, 0
      %v498 = vsel %vm418, %v403, 0
      %v501 = vsel %vm418, %v404, 0
      %v504 = vsel %vm418, %v405, 0
      %v507 = vsel %vm418, %v406, 0
      %v510 = vsel %vm418, %v407, 0
      %v513 = vsel %vm418, %v408, 0
      %515 = vmatprep.subr.mxu0 0.0
      %516 = vmatpush1.msra.mxu0 %v409
      %517 = vmatprep.subr.mxu0 0.0
      %518 = vmatpush1.msra.mxu0 %v410
      %519 = vmatprep.subr.mxu0 0.0
      %520 = vmatpush1.msra.mxu0 0.0
      %521 = vmatprep.subr.mxu0 0.0
      %522 = vmatpush1.msra.mxu0 0.0
      %523 = vmatprep.subr.mxu0 0.0
      %524 = vmatpush1.msra.mxu0 0.0
      %525 = vmatprep.subr.mxu0 0.0
      %526 = vmatpush1.msra.mxu0 0.0
      %527 = vmatprep.subr.mxu0 0.0
      %528 = vmatpush1.msra.mxu0 0.0
      %529 = vmatprep.subr.mxu0 0.0
      %530 = vmatpush1.msra.mxu0 0.0
      %531 = vmatprep.subr.mxu0 0.0
      %532 = vmatpush1.msra.mxu0 0.0
      %533 = vmatprep.subr.mxu0 0.0
      %534 = vmatpush1.msra.mxu0 0.0
      %535 = vmatprep.subr.mxu0 0.0
      %536 = vmatpush1.msra.mxu0 0.0
      %537 = vmatprep.subr.mxu0 0.0
      %538 = vmatpush1.msra.mxu0 0.0
      %539 = vmatprep.subr.mxu0 0.0
      %540 = vmatpush1.msra.mxu0 0.0
      %541 = vmatprep.subr.mxu0 0.0
      %542 = vmatpush1.msra.mxu0 0.0
      %543 = vmatprep.subr.mxu0 0.0
      %544 = vmatpush1.msra.mxu0 0.0
      %545 = vmatprep.subr.mxu0 0.0
      %546 = vmatpush1.msra.mxu0 0.0
      %547 = vmatprep.subr.mxu0 0.0
      %548 = vmatpush1.msra.mxu0 0.0
      %549 = vmatprep.subr.mxu0 0.0
      %550 = vmatpush1.msra.mxu0 0.0
      %551 = vmatprep.subr.mxu0 0.0
      %552 = vmatpush1.msra.mxu0 0.0
      %553 = vmatprep.subr.mxu0 0.0
      %554 = vmatpush1.msra.mxu0 0.0
      %555 = vmatprep.subr.mxu0 0.0
      %556 = vmatpush1.msra.mxu0 0.0
      %557 = vmatprep.subr.mxu0 0.0
      %558 = vmatpush1.msra.mxu0 0.0
      %559 = vmatprep.subr.mxu0 0.0
      %560 = vmatpush1.msra.mxu0 0.0
      %561 = vmatprep.subr.mxu0 0.0
      %562 = vmatpush1.msra.mxu0 0.0
      %563 = vmatprep.subr.mxu0 0.0
      %564 = vmatpush1.msra.mxu0 0.0
      %565 = vmatprep.subr.mxu0 0.0
      %566 = vmatpush1.msra.mxu0 0.0
      %567 = vmatprep.subr.mxu0 0.0
      %568 = vmatpush1.msra.mxu0 0.0
      %569 = vmatprep.subr.mxu0 0.0
      %570 = vmatpush1.msra.mxu0 0.0
      %571 = vmatprep.subr.mxu0 0.0
      %572 = vmatpush1.msra.mxu0 0.0
      %573 = vmatprep.subr.mxu0 0.0
      %574 = vmatpush1.msra.mxu0 0.0
      %575 = vmatprep.subr.mxu0 0.0
      %576 = vmatpush1.msra.mxu0 0.0
      %577 = vmatprep.subr.mxu0 0.0
      %578 = vmatpush1.msra.mxu0 0.0
      %579 = vmatprep.mubr.f32.mxu0 0.0
      %580 = vmatmul.mubr.f32.gmra.mrb[0].mxu0 %v420
      %v581 = vpop.f32.mrb[0].mxu0
      %v582 = vadd.f32 %v416, %v581
      %v583 = vpop.f32.mrb[0].mxu0
      %584 = vmatprep.mubr.f32.mxu0 0.0
      %585 = vmatmul.mubr.f32.gmra.mrb[0].mxu0 %v423
      %v586 = vpop.f32.mrb[0].mxu0
      %v587 = vadd.f32 %v416, %v586
      %v588 = vpop.f32.mrb[0].mxu0
      %589 = vmatprep.mubr.f32.mxu0 0.0
      %590 = vmatmul.mubr.f32.gmra.mrb[0].mxu0 %v426
      %v591 = vpop.f32.mrb[0].mxu0
      %v592 = vadd.f32 %v416, %v591
      %v593 = vpop.f32.mrb[0].mxu0
      %594 = vmatprep.mubr.f32.mxu0 0.0
      %595 = vmatmul.mubr.f32.gmra.mrb[0].mxu0 %v429
      %v596 = vpop.f32.mrb[0].mxu0
      %v597 = vadd.f32 %v416, %v596
      %v598 = vpop.f32.mrb[0].mxu0
      %599 = vmatprep.mubr.f32.mxu0 0.0
      %600 = vmatmul.mubr.f32.gmra.mrb[0].mxu0 %v432
      %v601 = vpop.f32.mrb[0].mxu0
      %v602 = vadd.f32 %v416, %v601
      %v603 = vpop.f32.mrb[0].mxu0
      %604 = vmatprep.mubr.f32.mxu0 0.0
      %605 = vmatmul.mubr.f32.gmra.mrb[0].mxu0 %v435
      %v606 = vpop.f32.mrb[0].mxu0
      %v607 = vadd.f32 %v416, %v606
      %v608 = vpop.f32.mrb[0].mxu0
      %609 = vmatprep.mubr.f32.mxu0 0.0
      %610 = vmatmul.mubr.f32.gmra.mrb[0].mxu0 %v438
      %v611 = vpop.f32.mrb[0].mxu0
      %v612 = vadd.f32 %v416, %v611
      %v613 = vpop.f32.mrb[0].mxu0
      %614 = vmatprep.mubr.f32.mxu0 0.0
      %615 = vmatmul.mubr.f32.gmra.mrb[0].mxu0 %v441
      %v616 = vpop.f32.mrb[0].mxu0
      %v617 = vadd.f32 %v416, %v616
      %v618 = vpop.f32.mrb[0].mxu0
      %619 = vmatprep.mubr.f32.mxu0 0.0
      %620 = vmatmul.mubr.f32.gmra.mrb[0].mxu0 %v444
      %v621 = vpop.f32.mrb[0].mxu0
      %v622 = vadd.f32 %v416, %v621
      %v623 = vpop.f32.mrb[0].mxu0
      %624 = vmatprep.mubr.f32.mxu0 0.0
      %625 = vmatmul.mubr.f32.gmra.mrb[0].mxu0 %v447
      %v626 = vpop.f32.mrb[0].mxu0
      %v627 = vadd.f32 %v416, %v626
      %v628 = vpop.f32.mrb[0].mxu0
      %629 = vmatprep.mubr.f32.mxu0 0.0
      %630 = vmatmul.mubr.f32.gmra.mrb[0].mxu0 %v450
      %v631 = vpop.f32.mrb[0].mxu0
      %v632 = vadd.f32 %v416, %v631
      %v633 = vpop.f32.mrb[0].mxu0
      %634 = vmatprep.mubr.f32.mxu0 0.0
      %635 = vmatmul.mubr.f32.gmra.mrb[0].mxu0 %v453
      %v636 = vpop.f32.mrb[0].mxu0
      %v637 = vadd.f32 %v416, %v636
      %v638 = vpop.f32.mrb[0].mxu0
      %639 = vmatprep.mubr.f32.mxu0 0.0
      %640 = vmatmul.mubr.f32.gmra.mrb[0].mxu0 %v456
      %v641 = vpop.f32.mrb[0].mxu0
      %v642 = vadd.f32 %v416, %v641
      %v643 = vpop.f32.mrb[0].mxu0
      %644 = vmatprep.mubr.f32.mxu0 0.0
      %645 = vmatmul.mubr.f32.gmra.mrb[0].mxu0 %v459
      %v646 = vpop.f32.mrb[0].mxu0
      %v647 = vadd.f32 %v416, %v646
      %v648 = vpop.f32.mrb[0].mxu0
      %649 = vmatprep.mubr.f32.mxu0 0.0
      %650 = vmatmul.mubr.f32.gmra.mrb[0].mxu0 %v462
      %v651 = vpop.f32.mrb[0].mxu0
      %v652 = vadd.f32 %v416, %v651
      %v653 = vpop.f32.mrb[0].mxu0
      %654 = vmatprep.mubr.f32.mxu0 0.0
      %655 = vmatmul.mubr.f32.gmra.mrb[0].mxu0 %v465
      %v656 = vpop.f32.mrb[0].mxu0
      %v657 = vadd.f32 %v416, %v656
      %v658 = vpop.f32.mrb[0].mxu0
      %659 = vmatprep.mubr.f32.mxu0 0.0
      %660 = vmatmul.mubr.f32.gmra.mrb[0].mxu0 %v468
      %v661 = vpop.f32.mrb[0].mxu0
      %v662 = vadd.f32 %v416, %v661
      %v663 = vpop.f32.mrb[0].mxu0
      %664 = vmatprep.mubr.f32.mxu0 0.0
      %665 = vmatmul.mubr.f32.gmra.mrb[0].mxu0 %v471
      %v666 = vpop.f32.mrb[0].mxu0
      %v667 = vadd.f32 %v416, %v666
      %v668 = vpop.f32.mrb[0].mxu0
      %669 = vmatprep.mubr.f32.mxu0 0.0
      %670 = vmatmul.mubr.f32.gmra.mrb[0].mxu0 %v474
      %v671 = vpop.f32.mrb[0].mxu0
      %v672 = vadd.f32 %v416, %v671
      %v673 = vpop.f32.mrb[0].mxu0
      %674 = vmatprep.mubr.f32.mxu0 0.0
      %675 = vmatmul.mubr.f32.gmra.mrb[0].mxu0 %v477
      %v676 = vpop.f32.mrb[0].mxu0
      %v677 = vadd.f32 %v416, %v676
      %v678 = vpop.f32.mrb[0].mxu0
      %679 = vmatprep.mubr.f32.mxu0 0.0
      %680 = vmatmul.mubr.f32.gmra.mrb[0].mxu0 %v480
      %v681 = vpop.f32.mrb[0].mxu0
      %v682 = vadd.f32 %v416, %v681
      %v683 = vpop.f32.mrb[0].mxu0
      %684 = vmatprep.mubr.f32.mxu0 0.0
      %685 = vmatmul.mubr.f32.gmra.mrb[0].mxu0 %v483
      %v686 = vpop.f32.mrb[0].mxu0
      %v687 = vadd.f32 %v416, %v686
      %v688 = vpop.f32.mrb[0].mxu0
      %689 = vmatprep.mubr.f32.mxu0 0.0
      %690 = vmatmul.mubr.f32.gmra.mrb[0].mxu0 %v486
      %v691 = vpop.f32.mrb[0].mxu0
      %v692 = vadd.f32 %v416, %v691
      %v693 = vpop.f32.mrb[0].mxu0
      %694 = vmatprep.mubr.f32.mxu0 0.0
      %695 = vmatmul.mubr.f32.gmra.mrb[0].mxu0 %v489
      %v696 = vpop.f32.mrb[0].mxu0
      %v697 = vadd.f32 %v416, %v696
      %v698 = vpop.f32.mrb[0].mxu0
      %699 = vmatprep.mubr.f32.mxu0 0.0
      %700 = vmatmul.mubr.f32.gmra.mrb[0].mxu0 %v492
      %v701 = vpop.f32.mrb[0].mxu0
      %v702 = vadd.f32 %v416, %v701
      %v703 = vpop.f32.mrb[0].mxu0
      %704 = vmatprep.mubr.f32.mxu0 0.0
      %705 = vmatmul.mubr.f32.gmra.mrb[0].mxu0 %v495
      %v706 = vpop.f32.mrb[0].mxu0
      %v707 = vadd.f32 %v416, %v706
      %v708 = vpop.f32.mrb[0].mxu0
      %709 = vmatprep.mubr.f32.mxu0 0.0
      %710 = vmatmul.mubr.f32.gmra.mrb[0].mxu0 %v498
      %v711 = vpop.f32.mrb[0].mxu0
      %v712 = vadd.f32 %v416, %v711
      %v713 = vpop.f32.mrb[0].mxu0
      %714 = vmatprep.mubr.f32.mxu0 0.0
      %715 = vmatmul.mubr.f32.gmra.mrb[0].mxu0 %v501
      %v716 = vpop.f32.mrb[0].mxu0
      %v717 = vadd.f32 %v416, %v716
      %v718 = vpop.f32.mrb[0].mxu0
      %719 = vmatprep.mubr.f32.mxu0 0.0
      %720 = vmatmul.mubr.f32.gmra.mrb[0].mxu0 %v504
      %v721 = vpop.f32.mrb[0].mxu0
      %v722 = vadd.f32 %v416, %v721
      %v723 = vpop.f32.mrb[0].mxu0
      %724 = vmatprep.mubr.f32.mxu0 0.0
      %725 = vmatmul.mubr.f32.gmra.mrb[0].mxu0 %v507
      %v726 = vpop.f32.mrb[0].mxu0
      %v727 = vadd.f32 %v416, %v726
      %v728 = vpop.f32.mrb[0].mxu0
      %729 = vmatprep.mubr.f32.mxu0 0.0
      %730 = vmatmul.mubr.f32.gmra.mrb[0].mxu0 %v510
      %v731 = vpop.f32.mrb[0].mxu0
      %v732 = vadd.f32 %v416, %v731
      %v733 = vpop.f32.mrb[0].mxu0
      %734 = vmatprep.mubr.f32.mxu0 0.0
      %735 = vmatmul.mubr.f32.gmra.mrb[0].mxu0 %v513
      %v736 = vpop.f32.mrb[0].mxu0
      %v737 = vadd.f32 %v416, %v736
      %v738 = vpop.f32.mrb[0].mxu0
      %739 = vdwg.mxu0
      %v740 = vmax.f32 %v582, 0.0
      %v741 = vmax.f32 %v587, 0.0
      %v742 = vmax.f32 %v592, 0.0
      %v743 = vmax.f32 %v597, 0.0
      %v744 = vmax.f32 %v602, 0.0
      %v745 = vmax.f32 %v607, 0.0
      %v746 = vmax.f32 %v612, 0.0
      %v747 = vmax.f32 %v617, 0.0
      %v748 = vmax.f32 %v622, 0.0
      %v749 = vmax.f32 %v627, 0.0
      %v750 = vmax.f32 %v632, 0.0
      %v751 = vmax.f32 %v637, 0.0
      %v752 = vmax.f32 %v642, 0.0
      %v753 = vmax.f32 %v647, 0.0
      %v754 = vmax.f32 %v652, 0.0
      %v755 = vmax.f32 %v657, 0.0
      %v756 = vmax.f32 %v662, 0.0
      %v757 = vmax.f32 %v667, 0.0
      %v758 = vmax.f32 %v672, 0.0
      %v759 = vmax.f32 %v677, 0.0
      %v760 = vmax.f32 %v682, 0.0
      %v761 = vmax.f32 %v687, 0.0
      %v762 = vmax.f32 %v692, 0.0
      %v763 = vmax.f32 %v697, 0.0
      %v764 = vmax.f32 %v702, 0.0
      %v765 = vmax.f32 %v707, 0.0
      %v766 = vmax.f32 %v712, 0.0
      %v767 = vmax.f32 %v717, 0.0
      %v768 = vmax.f32 %v722, 0.0
      %v769 = vmax.f32 %v727, 0.0
      %v770 = vmax.f32 %v732, 0.0
      %v771 = vmax.f32 %v737, 0.0
      %v772 = vld [vmem:[%s3] sm:$0xff]
      %v773 = vld [vmem:[%s3 + $0x8] sm:$0xff]
      %v774 = vld [vmem:[%s3 + $0x10] sm:$0xff]
      %v775 = vld [vmem:[%s3 + $0x18] sm:$0xff]
      %v776 = vld [vmem:[%s4] sm:$0x1]
      %v778 = vlaneseq
      %v779 = vshrl.u32 %v778, 7
      %v780 = vsub.s32 0, %v779
      %v781 = vrot.slane %v776, %v780
      %vm783 = vcmask 261120
      %v785 = vsel %vm783, %v740, 0
      %v788 = vsel %vm783, %v741, 0
      %v791 = vsel %vm783, %v742, 0
      %v794 = vsel %vm783, %v743, 0
      %v797 = vsel %vm783, %v744, 0
      %v800 = vsel %vm783, %v745, 0
      %v803 = vsel %vm783, %v746, 0
      %v806 = vsel %vm783, %v747, 0
      %v809 = vsel %vm783, %v748, 0
      %v812 = vsel %vm783, %v749, 0
      %v815 = vsel %vm783, %v750, 0
      %v818 = vsel %vm783, %v751, 0
      %v821 = vsel %vm783, %v752, 0
      %v824 = vsel %vm783, %v753, 0
      %v827 = vsel %vm783, %v754, 0
      %v830 = vsel %vm783, %v755, 0
      %v833 = vsel %vm783, %v756, 0
      %v836 = vsel %vm783, %v757, 0
      %v839 = vsel %vm783, %v758, 0
      %v842 = vsel %vm783, %v759, 0
      %v845 = vsel %vm783, %v760, 0
      %v848 = vsel %vm783, %v761, 0
      %v851 = vsel %vm783, %v762, 0
      %v854 = vsel %vm783, %v763, 0
      %v857 = vsel %vm783, %v764, 0
      %v860 = vsel %vm783, %v765, 0
      %v863 = vsel %vm783, %v766, 0
      %v866 = vsel %vm783, %v767, 0
      %v869 = vsel %vm783, %v768, 0
      %v872 = vsel %vm783, %v769, 0
      %v875 = vsel %vm783, %v770, 0
      %v878 = vsel %vm783, %v771, 0
      %880 = vmatprep.subr.mxu0 0.0
      %881 = vmatpush1.msra.mxu0 %v772
      %882 = vmatprep.subr.mxu0 0.0
      %883 = vmatpush1.msra.mxu0 %v773
      %884 = vmatprep.subr.mxu0 0.0
      %885 = vmatpush1.msra.mxu0 %v774
      %886 = vmatprep.subr.mxu0 0.0
      %887 = vmatpush1.msra.mxu0 %v775
      %888 = vmatprep.subr.mxu0 0.0
      %889 = vmatpush1.msra.mxu0 0.0
      %890 = vmatprep.subr.mxu0 0.0
      %891 = vmatpush1.msra.mxu0 0.0
      %892 = vmatprep.subr.mxu0 0.0
      %893 = vmatpush1.msra.mxu0 0.0
      %894 = vmatprep.subr.mxu0 0.0
      %895 = vmatpush1.msra.mxu0 0.0
      %896 = vmatprep.subr.mxu0 0.0
      %897 = vmatpush1.msra.mxu0 0.0
      %898 = vmatprep.subr.mxu0 0.0
      %899 = vmatpush1.msra.mxu0 0.0
      %900 = vmatprep.subr.mxu0 0.0
      %901 = vmatpush1.msra.mxu0 0.0
      %902 = vmatprep.subr.mxu0 0.0
      %903 = vmatpush1.msra.mxu0 0.0
      %904 = vmatprep.subr.mxu0 0.0
      %905 = vmatpush1.msra.mxu0 0.0
      %906 = vmatprep.subr.mxu0 0.0
      %907 = vmatpush1.msra.mxu0 0.0
      %908 = vmatprep.subr.mxu0 0.0
      %909 = vmatpush1.msra.mxu0 0.0
      %910 = vmatprep.subr.mxu0 0.0
      %911 = vmatpush1.msra.mxu0 0.0
      %912 = vmatprep.subr.mxu0 0.0
      %913 = vmatpush1.msra.mxu0 0.0
      %914 = vmatprep.subr.mxu0 0.0
      %915 = vmatpush1.msra.mxu0 0.0
      %916 = vmatprep.subr.mxu0 0.0
      %917 = vmatpush1.msra.mxu0 0.0
      %918 = vmatprep.subr.mxu0 0.0
      %919 = vmatpush1.msra.mxu0 0.0
      %920 = vmatprep.subr.mxu0 0.0
      %921 = vmatpush1.msra.mxu0 0.0
      %922 = vmatprep.subr.mxu0 0.0
      %923 = vmatpush1.msra.mxu0 0.0
      %924 = vmatprep.subr.mxu0 0.0
      %925 = vmatpush1.msra.mxu0 0.0
      %926 = vmatprep.subr.mxu0 0.0
      %927 = vmatpush1.msra.mxu0 0.0
      %928 = vmatprep.subr.mxu0 0.0
      %929 = vmatpush1.msra.mxu0 0.0
      %930 = vmatprep.subr.mxu0 0.0
      %931 = vmatpush1.msra.mxu0 0.0
      %932 = vmatprep.subr.mxu0 0.0
      %933 = vmatpush1.msra.mxu0 0.0
      %934 = vmatprep.subr.mxu0 0.0
      %935 = vmatpush1.msra.mxu0 0.0
      %936 = vmatprep.subr.mxu0 0.0
      %937 = vmatpush1.msra.mxu0 0.0
      %938 = vmatprep.subr.mxu0 0.0
      %939 = vmatpush1.msra.mxu0 0.0
      %940 = vmatprep.subr.mxu0 0.0
      %941 = vmatpush1.msra.mxu0 0.0
      %942 = vmatprep.subr.mxu0 0.0
      %943 = vmatpush1.msra.mxu0 0.0
      %944 = vmatprep.mubr.f32.mxu0 0.0
      %945 = vmatmul.mubr.f32.gmra.mrb[0].mxu0 %v785
      %v946 = vpop.f32.mrb[0].mxu0
      %v947 = vadd.f32 %v781, %v946
      %v948 = vpop.f32.mrb[0].mxu0
      %949 = vmatprep.mubr.f32.mxu0 0.0
      %950 = vmatmul.mubr.f32.gmra.mrb[0].mxu0 %v788
      %v951 = vpop.f32.mrb[0].mxu0
      %v952 = vadd.f32 %v781, %v951
      %v953 = vpop.f32.mrb[0].mxu0
      %954 = vmatprep.mubr.f32.mxu0 0.0
      %955 = vmatmul.mubr.f32.gmra.mrb[0].mxu0 %v791
      %v956 = vpop.f32.mrb[0].mxu0
      %v957 = vadd.f32 %v781, %v956
      %v958 = vpop.f32.mrb[0].mxu0
      %959 = vmatprep.mubr.f32.mxu0 0.0
      %960 = vmatmul.mubr.f32.gmra.mrb[0].mxu0 %v794
      %v961 = vpop.f32.mrb[0].mxu0
      %v962 = vadd.f32 %v781, %v961
      %v963 = vpop.f32.mrb[0].mxu0
      %964 = vmatprep.mubr.f32.mxu0 0.0
      %965 = vmatmul.mubr.f32.gmra.mrb[0].mxu0 %v797
      %v966 = vpop.f32.mrb[0].mxu0
      %v967 = vadd.f32 %v781, %v966
      %v968 = vpop.f32.mrb[0].mxu0
      %969 = vmatprep.mubr.f32.mxu0 0.0
      %970 = vmatmul.mubr.f32.gmra.mrb[0].mxu0 %v800
      %v971 = vpop.f32.mrb[0].mxu0
      %v972 = vadd.f32 %v781, %v971
      %v973 = vpop.f32.mrb[0].mxu0
      %974 = vmatprep.mubr.f32.mxu0 0.0
      %975 = vmatmul.mubr.f32.gmra.mrb[0].mxu0 %v803
      %v976 = vpop.f32.mrb[0].mxu0
      %v977 = vadd.f32 %v781, %v976
      %v978 = vpop.f32.mrb[0].mxu0
      %979 = vmatprep.mubr.f32.mxu0 0.0
      %980 = vmatmul.mubr.f32.gmra.mrb[0].mxu0 %v806
      %v981 = vpop.f32.mrb[0].mxu0
      %v982 = vadd.f32 %v781, %v981
      %v983 = vpop.f32.mrb[0].mxu0
      %984 = vmatprep.mubr.f32.mxu0 0.0
      %985 = vmatmul.mubr.f32.gmra.mrb[0].mxu0 %v809
      %v986 = vpop.f32.mrb[0].mxu0
      %v987 = vadd.f32 %v781, %v986
      %v988 = vpop.f32.mrb[0].mxu0
      %989 = vmatprep.mubr.f32.mxu0 0.0
      %990 = vmatmul.mubr.f32.gmra.mrb[0].mxu0 %v812
      %v991 = vpop.f32.mrb[0].mxu0
      %v992 = vadd.f32 %v781, %v991
      %v993 = vpop.f32.mrb[0].mxu0
      %994 = vmatprep.mubr.f32.mxu0 0.0
      %995 = vmatmul.mubr.f32.gmra.mrb[0].mxu0 %v815
      %v996 = vpop.f32.mrb[0].mxu0
      %v997 = vadd.f32 %v781, %v996
      %v998 = vpop.f32.mrb[0].mxu0
      %999 = vmatprep.mubr.f32.mxu0 0.0
      %1000 = vmatmul.mubr.f32.gmra.mrb[0].mxu0 %v818
      %v1001 = vpop.f32.mrb[0].mxu0
      %v1002 = vadd.f32 %v781, %v1001
      %v1003 = vpop.f32.mrb[0].mxu0
      %1004 = vmatprep.mubr.f32.mxu0 0.0
      %1005 = vmatmul.mubr.f32.gmra.mrb[0].mxu0 %v821
      %v1006 = vpop.f32.mrb[0].mxu0
      %v1007 = vadd.f32 %v781, %v1006
      %v1008 = vpop.f32.mrb[0].mxu0
      %1009 = vmatprep.mubr.f32.mxu0 0.0
      %1010 = vmatmul.mubr.f32.gmra.mrb[0].mxu0 %v824
      %v1011 = vpop.f32.mrb[0].mxu0
      %v1012 = vadd.f32 %v781, %v1011
      %v1013 = vpop.f32.mrb[0].mxu0
      %1014 = vmatprep.mubr.f32.mxu0 0.0
      %1015 = vmatmul.mubr.f32.gmra.mrb[0].mxu0 %v827
      %v1016 = vpop.f32.mrb[0].mxu0
      %v1017 = vadd.f32 %v781, %v1016
      %v1018 = vpop.f32.mrb[0].mxu0
      %1019 = vmatprep.mubr.f32.mxu0 0.0
      %1020 = vmatmul.mubr.f32.gmra.mrb[0].mxu0 %v830
      %v1021 = vpop.f32.mrb[0].mxu0
      %v1022 = vadd.f32 %v781, %v1021
      %v1023 = vpop.f32.mrb[0].mxu0
      %1024 = vmatprep.mubr.f32.mxu0 0.0
      %1025 = vmatmul.mubr.f32.gmra.mrb[0].mxu0 %v833
      %v1026 = vpop.f32.mrb[0].mxu0
      %v1027 = vadd.f32 %v781, %v1026
      %v1028 = vpop.f32.mrb[0].mxu0
      %1029 = vmatprep.mubr.f32.mxu0 0.0
      %1030 = vmatmul.mubr.f32.gmra.mrb[0].mxu0 %v836
      %v1031 = vpop.f32.mrb[0].mxu0
      %v1032 = vadd.f32 %v781, %v1031
      %v1033 = vpop.f32.mrb[0].mxu0
      %1034 = vmatprep.mubr.f32.mxu0 0.0
      %1035 = vmatmul.mubr.f32.gmra.mrb[0].mxu0 %v839
      %v1036 = vpop.f32.mrb[0].mxu0
      %v1037 = vadd.f32 %v781, %v1036
      %v1038 = vpop.f32.mrb[0].mxu0
      %1039 = vmatprep.mubr.f32.mxu0 0.0
      %1040 = vmatmul.mubr.f32.gmra.mrb[0].mxu0 %v842
      %v1041 = vpop.f32.mrb[0].mxu0
      %v1042 = vadd.f32 %v781, %v1041
      %v1043 = vpop.f32.mrb[0].mxu0
      %1044 = vmatprep.mubr.f32.mxu0 0.0
      %1045 = vmatmul.mubr.f32.gmra.mrb[0].mxu0 %v845
      %v1046 = vpop.f32.mrb[0].mxu0
      %v1047 = vadd.f32 %v781, %v1046
      %v1048 = vpop.f32.mrb[0].mxu0
      %1049 = vmatprep.mubr.f32.mxu0 0.0
      %1050 = vmatmul.mubr.f32.gmra.mrb[0].mxu0 %v848
      %v1051 = vpop.f32.mrb[0].mxu0
      %v1052 = vadd.f32 %v781, %v1051
      %v1053 = vpop.f32.mrb[0].mxu0
      %1054 = vmatprep.mubr.f32.mxu0 0.0
      %1055 = vmatmul.mubr.f32.gmra.mrb[0].mxu0 %v851
      %v1056 = vpop.f32.mrb[0].mxu0
      %v1057 = vadd.f32 %v781, %v1056
      %v1058 = vpop.f32.mrb[0].mxu0
      %1059 = vmatprep.mubr.f32.mxu0 0.0
      %1060 = vmatmul.mubr.f32.gmra.mrb[0].mxu0 %v854
      %v1061 = vpop.f32.mrb[0].mxu0
      %v1062 = vadd.f32 %v781, %v1061
      %v1063 = vpop.f32.mrb[0].mxu0
      %1064 = vmatprep.mubr.f32.mxu0 0.0
      %1065 = vmatmul.mubr.f32.gmra.mrb[0].mxu0 %v857
      %v1066 = vpop.f32.mrb[0].mxu0
      %v1067 = vadd.f32 %v781, %v1066
      %v1068 = vpop.f32.mrb[0].mxu0
      %1069 = vmatprep.mubr.f32.mxu0 0.0
      %1070 = vmatmul.mubr.f32.gmra.mrb[0].mxu0 %v860
      %v1071 = vpop.f32.mrb[0].mxu0
      %v1072 = vadd.f32 %v781, %v1071
      %v1073 = vpop.f32.mrb[0].mxu0
      %1074 = vmatprep.mubr.f32.mxu0 0.0
      %1075 = vmatmul.mubr.f32.gmra.mrb[0].mxu0 %v863
      %v1076 = vpop.f32.mrb[0].mxu0
      %v1077 = vadd.f32 %v781, %v1076
      %v1078 = vpop.f32.mrb[0].mxu0
      %1079 = vmatprep.mubr.f32.mxu0 0.0
      %1080 = vmatmul.mubr.f32.gmra.mrb[0].mxu0 %v866
      %v1081 = vpop.f32.mrb[0].mxu0
      %v1082 = vadd.f32 %v781, %v1081
      %v1083 = vpop.f32.mrb[0].mxu0
      %1084 = vmatprep.mubr.f32.mxu0 0.0
      %1085 = vmatmul.mubr.f32.gmra.mrb[0].mxu0 %v869
      %v1086 = vpop.f32.mrb[0].mxu0
      %v1087 = vadd.f32 %v781, %v1086
      %v1088 = vpop.f32.mrb[0].mxu0
      %1089 = vmatprep.mubr.f32.mxu0 0.0
      %1090 = vmatmul.mubr.f32.gmra.mrb[0].mxu0 %v872
      %v1091 = vpop.f32.mrb[0].mxu0
      %v1092 = vadd.f32 %v781, %v1091
      %v1093 = vpop.f32.mrb[0].mxu0
      %1094 = vmatprep.mubr.f32.mxu0 0.0
      %1095 = vmatmul.mubr.f32.gmra.mrb[0].mxu0 %v875
      %v1096 = vpop.f32.mrb[0].mxu0
      %v1097 = vadd.f32 %v781, %v1096
      %v1098 = vpop.f32.mrb[0].mxu0
      %1099 = vmatprep.mubr.f32.mxu0 0.0
      %1100 = vmatmul.mubr.f32.gmra.mrb[0].mxu0 %v878
      %v1101 = vpop.f32.mrb[0].mxu0
      %v1102 = vadd.f32 %v781, %v1101
      %v1103 = vpop.f32.mrb[0].mxu0
      %1104 = vdwg.mxu0
      %v1105 = vmax.f32 %v947, 0.0
      %v1106 = vmax.f32 %v952, 0.0
      %v1107 = vmax.f32 %v957, 0.0
      %v1108 = vmax.f32 %v962, 0.0
      %v1109 = vmax.f32 %v967, 0.0
      %v1110 = vmax.f32 %v972, 0.0
      %v1111 = vmax.f32 %v977, 0.0
      %v1112 = vmax.f32 %v982, 0.0
      %v1113 = vmax.f32 %v987, 0.0
      %v1114 = vmax.f32 %v992, 0.0
      %v1115 = vmax.f32 %v997, 0.0
      %v1116 = vmax.f32 %v1002, 0.0
      %v1117 = vmax.f32 %v1007, 0.0
      %v1118 = vmax.f32 %v1012, 0.0
      %v1119 = vmax.f32 %v1017, 0.0
      %v1120 = vmax.f32 %v1022, 0.0
      %v1121 = vmax.f32 %v1027, 0.0
      %v1122 = vmax.f32 %v1032, 0.0
      %v1123 = vmax.f32 %v1037, 0.0
      %v1124 = vmax.f32 %v1042, 0.0
      %v1125 = vmax.f32 %v1047, 0.0
      %v1126 = vmax.f32 %v1052, 0.0
      %v1127 = vmax.f32 %v1057, 0.0
      %v1128 = vmax.f32 %v1062, 0.0
      %v1129 = vmax.f32 %v1067, 0.0
      %v1130 = vmax.f32 %v1072, 0.0
      %v1131 = vmax.f32 %v1077, 0.0
      %v1132 = vmax.f32 %v1082, 0.0
      %v1133 = vmax.f32 %v1087, 0.0
      %v1134 = vmax.f32 %v1092, 0.0
      %v1135 = vmax.f32 %v1097, 0.0
      %v1136 = vmax.f32 %v1102, 0.0
      %v1137 = vld [vmem:[%s5] sm:$0xff]
      %v1138 = vld [vmem:[%s5 + $0x8] sm:$0xff]
      %v1139 = vld [vmem:[%s5 + $0x10] sm:$0xff]
      %v1140 = vld [vmem:[%s5 + $0x18] sm:$0xff]
      %v1141 = vld [vmem:[%s5 + $0x20] sm:$0xff]
      %v1142 = vld [vmem:[%s5 + $0x28] sm:$0xff]
      %v1143 = vld [vmem:[%s5 + $0x30] sm:$0xff]
      %v1144 = vld [vmem:[%s5 + $0x38] sm:$0xff]
      %v1145 = vld [vmem:[%s5 + $0x40] sm:$0xff]
      %v1146 = vld [vmem:[%s5 + $0x48] sm:$0xff]
      %v1147 = vld [vmem:[%s5 + $0x50] sm:$0xff]
      %v1148 = vld [vmem:[%s5 + $0x58] sm:$0xff]
      %v1149 = vld [vmem:[%s5 + $0x60] sm:$0xff]
      %v1150 = vld [vmem:[%s5 + $0x68] sm:$0xff]
      %v1151 = vld [vmem:[%s5 + $0x70] sm:$0xff]
      %v1152 = vld [vmem:[%s5 + $0x78] sm:$0xff]
      %v1153 = vld [vmem:[%s6] sm:$0x1]
      %v1155 = vlaneseq
      %v1156 = vshrl.u32 %v1155, 7
      %v1157 = vsub.s32 0, %v1156
      %v1158 = vrot.slane %v1153, %v1157
      %1160 = vmatprep.subr.mxu0 0.0
      %1161 = vmatpush1.msra.mxu0 %v1137
      %1162 = vmatprep.subr.mxu0 0.0
      %1163 = vmatpush1.msra.mxu0 %v1138
      %1164 = vmatprep.subr.mxu0 0.0
      %1165 = vmatpush1.msra.mxu0 %v1139
      %1166 = vmatprep.subr.mxu0 0.0
      %1167 = vmatpush1.msra.mxu0 %v1140
      %1168 = vmatprep.subr.mxu0 0.0
      %1169 = vmatpush1.msra.mxu0 %v1141
      %1170 = vmatprep.subr.mxu0 0.0
      %1171 = vmatpush1.msra.mxu0 %v1142
      %1172 = vmatprep.subr.mxu0 0.0
      %1173 = vmatpush1.msra.mxu0 %v1143
      %1174 = vmatprep.subr.mxu0 0.0
      %1175 = vmatpush1.msra.mxu0 %v1144
      %1176 = vmatprep.subr.mxu0 0.0
      %1177 = vmatpush1.msra.mxu0 %v1145
      %1178 = vmatprep.subr.mxu0 0.0
      %1179 = vmatpush1.msra.mxu0 %v1146
      %1180 = vmatprep.subr.mxu0 0.0
      %1181 = vmatpush1.msra.mxu0 %v1147
      %1182 = vmatprep.subr.mxu0 0.0
      %1183 = vmatpush1.msra.mxu0 %v1148
      %1184 = vmatprep.subr.mxu0 0.0
      %1185 = vmatpush1.msra.mxu0 %v1149
      %1186 = vmatprep.subr.mxu0 0.0
      %1187 = vmatpush1.msra.mxu0 %v1150
      %1188 = vmatprep.subr.mxu0 0.0
      %1189 = vmatpush1.msra.mxu0 %v1151
      %1190 = vmatprep.subr.mxu0 0.0
      %1191 = vmatpush1.msra.mxu0 %v1152
      %1192 = vmatprep.subr.mxu0 0.0
      %1193 = vmatpush1.msra.mxu0 0.0
      %1194 = vmatprep.subr.mxu0 0.0
      %1195 = vmatpush1.msra.mxu0 0.0
      %1196 = vmatprep.subr.mxu0 0.0
      %1197 = vmatpush1.msra.mxu0 0.0
      %1198 = vmatprep.subr.mxu0 0.0
      %1199 = vmatpush1.msra.mxu0 0.0
      %1200 = vmatprep.subr.mxu0 0.0
      %1201 = vmatpush1.msra.mxu0 0.0
      %1202 = vmatprep.subr.mxu0 0.0
      %1203 = vmatpush1.msra.mxu0 0.0
      %1204 = vmatprep.subr.mxu0 0.0
      %1205 = vmatpush1.msra.mxu0 0.0
      %1206 = vmatprep.subr.mxu0 0.0
      %1207 = vmatpush1.msra.mxu0 0.0
      %1208 = vmatprep.subr.mxu0 0.0
      %1209 = vmatpush1.msra.mxu0 0.0
      %1210 = vmatprep.subr.mxu0 0.0
      %1211 = vmatpush1.msra.mxu0 0.0
      %1212 = vmatprep.subr.mxu0 0.0
      %1213 = vmatpush1.msra.mxu0 0.0
      %1214 = vmatprep.subr.mxu0 0.0
      %1215 = vmatpush1.msra.mxu0 0.0
      %1216 = vmatprep.subr.mxu0 0.0
      %1217 = vmatpush1.msra.mxu0 0.0
      %1218 = vmatprep.subr.mxu0 0.0
      %1219 = vmatpush1.msra.mxu0 0.0
      %1220 = vmatprep.subr.mxu0 0.0
      %1221 = vmatpush1.msra.mxu0 0.0
      %1222 = vmatprep.subr.mxu0 0.0
      %1223 = vmatpush1.msra.mxu0 0.0
      %1224 = vmatprep.mubr.f32.mxu0 0.0
      %1225 = vmatmul.mubr.f32.gmra.mrb[0].mxu0 %v1105
      %v1226 = vpop.f32.mrb[0].mxu0
      %v1227 = vadd.f32 %v1158, %v1226
      %v1228 = vpop.f32.mrb[0].mxu0
      %1229 = vmatprep.mubr.f32.mxu0 0.0
      %1230 = vmatmul.mubr.f32.gmra.mrb[0].mxu0 %v1106
      %v1231 = vpop.f32.mrb[0].mxu0
      %v1232 = vadd.f32 %v1158, %v1231
      %v1233 = vpop.f32.mrb[0].mxu0
      %1234 = vmatprep.mubr.f32.mxu0 0.0
      %1235 = vmatmul.mubr.f32.gmra.mrb[0].mxu0 %v1107
      %v1236 = vpop.f32.mrb[0].mxu0
      %v1237 = vadd.f32 %v1158, %v1236
      %v1238 = vpop.f32.mrb[0].mxu0
      %1239 = vmatprep.mubr.f32.mxu0 0.0
      %1240 = vmatmul.mubr.f32.gmra.mrb[0].mxu0 %v1108
      %v1241 = vpop.f32.mrb[0].mxu0
      %v1242 = vadd.f32 %v1158, %v1241
      %v1243 = vpop.f32.mrb[0].mxu0
      %1244 = vmatprep.mubr.f32.mxu0 0.0
      %1245 = vmatmul.mubr.f32.gmra.mrb[0].mxu0 %v1109
      %v1246 = vpop.f32.mrb[0].mxu0
      %v1247 = vadd.f32 %v1158, %v1246
      %v1248 = vpop.f32.mrb[0].mxu0
      %1249 = vmatprep.mubr.f32.mxu0 0.0
      %1250 = vmatmul.mubr.f32.gmra.mrb[0].mxu0 %v1110
      %v1251 = vpop.f32.mrb[0].mxu0
      %v1252 = vadd.f32 %v1158, %v1251
      %v1253 = vpop.f32.mrb[0].mxu0
      %1254 = vmatprep.mubr.f32.mxu0 0.0
      %1255 = vmatmul.mubr.f32.gmra.mrb[0].mxu0 %v1111
      %v1256 = vpop.f32.mrb[0].mxu0
      %v1257 = vadd.f32 %v1158, %v1256
      %v1258 = vpop.f32.mrb[0].mxu0
      %1259 = vmatprep.mubr.f32.mxu0 0.0
      %1260 = vmatmul.mubr.f32.gmra.mrb[0].mxu0 %v1112
      %v1261 = vpop.f32.mrb[0].mxu0
      %v1262 = vadd.f32 %v1158, %v1261
      %v1263 = vpop.f32.mrb[0].mxu0
      %1264 = vmatprep.mubr.f32.mxu0 0.0
      %1265 = vmatmul.mubr.f32.gmra.mrb[0].mxu0 %v1113
      %v1266 = vpop.f32.mrb[0].mxu0
      %v1267 = vadd.f32 %v1158, %v1266
      %v1268 = vpop.f32.mrb[0].mxu0
      %1269 = vmatprep.mubr.f32.mxu0 0.0
      %1270 = vmatmul.mubr.f32.gmra.mrb[0].mxu0 %v1114
      %v1271 = vpop.f32.mrb[0].mxu0
      %v1272 = vadd.f32 %v1158, %v1271
      %v1273 = vpop.f32.mrb[0].mxu0
      %1274 = vmatprep.mubr.f32.mxu0 0.0
      %1275 = vmatmul.mubr.f32.gmra.mrb[0].mxu0 %v1115
      %v1276 = vpop.f32.mrb[0].mxu0
      %v1277 = vadd.f32 %v1158, %v1276
      %v1278 = vpop.f32.mrb[0].mxu0
      %1279 = vmatprep.mubr.f32.mxu0 0.0
      %1280 = vmatmul.mubr.f32.gmra.mrb[0].mxu0 %v1116
      %v1281 = vpop.f32.mrb[0].mxu0
      %v1282 = vadd.f32 %v1158, %v1281
      %v1283 = vpop.f32.mrb[0].mxu0
      %1284 = vmatprep.mubr.f32.mxu0 0.0
      %1285 = vmatmul.mubr.f32.gmra.mrb[0].mxu0 %v1117
      %v1286 = vpop.f32.mrb[0].mxu0
      %v1287 = vadd.f32 %v1158, %v1286
      %v1288 = vpop.f32.mrb[0].mxu0
      %1289 = vmatprep.mubr.f32.mxu0 0.0
      %1290 = vmatmul.mubr.f32.gmra.mrb[0].mxu0 %v1118
      %v1291 = vpop.f32.mrb[0].mxu0
      %v1292 = vadd.f32 %v1158, %v1291
      %v1293 = vpop.f32.mrb[0].mxu0
      %1294 = vmatprep.mubr.f32.mxu0 0.0
      %1295 = vmatmul.mubr.f32.gmra.mrb[0].mxu0 %v1119
      %v1296 = vpop.f32.mrb[0].mxu0
      %v1297 = vadd.f32 %v1158, %v1296
      %v1298 = vpop.f32.mrb[0].mxu0
      %1299 = vmatprep.mubr.f32.mxu0 0.0
      %1300 = vmatmul.mubr.f32.gmra.mrb[0].mxu0 %v1120
      %v1301 = vpop.f32.mrb[0].mxu0
      %v1302 = vadd.f32 %v1158, %v1301
      %v1303 = vpop.f32.mrb[0].mxu0
      %1304 = vmatprep.mubr.f32.mxu0 0.0
      %1305 = vmatmul.mubr.f32.gmra.mrb[0].mxu0 %v1121
      %v1306 = vpop.f32.mrb[0].mxu0
      %v1307 = vadd.f32 %v1158, %v1306
      %v1308 = vpop.f32.mrb[0].mxu0
      %1309 = vmatprep.mubr.f32.mxu0 0.0
      %1310 = vmatmul.mubr.f32.gmra.mrb[0].mxu0 %v1122
      %v1311 = vpop.f32.mrb[0].mxu0
      %v1312 = vadd.f32 %v1158, %v1311
      %v1313 = vpop.f32.mrb[0].mxu0
      %1314 = vmatprep.mubr.f32.mxu0 0.0
      %1315 = vmatmul.mubr.f32.gmra.mrb[0].mxu0 %v1123
      %v1316 = vpop.f32.mrb[0].mxu0
      %v1317 = vadd.f32 %v1158, %v1316
      %v1318 = vpop.f32.mrb[0].mxu0
      %1319 = vmatprep.mubr.f32.mxu0 0.0
      %1320 = vmatmul.mubr.f32.gmra.mrb[0].mxu0 %v1124
      %v1321 = vpop.f32.mrb[0].mxu0
      %v1322 = vadd.f32 %v1158, %v1321
      %v1323 = vpop.f32.mrb[0].mxu0
      %1324 = vmatprep.mubr.f32.mxu0 0.0
      %1325 = vmatmul.mubr.f32.gmra.mrb[0].mxu0 %v1125
      %v1326 = vpop.f32.mrb[0].mxu0
      %v1327 = vadd.f32 %v1158, %v1326
      %v1328 = vpop.f32.mrb[0].mxu0
      %1329 = vmatprep.mubr.f32.mxu0 0.0
      %1330 = vmatmul.mubr.f32.gmra.mrb[0].mxu0 %v1126
      %v1331 = vpop.f32.mrb[0].mxu0
      %v1332 = vadd.f32 %v1158, %v1331
      %v1333 = vpop.f32.mrb[0].mxu0
      %1334 = vmatprep.mubr.f32.mxu0 0.0
      %1335 = vmatmul.mubr.f32.gmra.mrb[0].mxu0 %v1127
      %v1336 = vpop.f32.mrb[0].mxu0
      %v1337 = vadd.f32 %v1158, %v1336
      %v1338 = vpop.f32.mrb[0].mxu0
      %1339 = vmatprep.mubr.f32.mxu0 0.0
      %1340 = vmatmul.mubr.f32.gmra.mrb[0].mxu0 %v1128
      %v1341 = vpop.f32.mrb[0].mxu0
      %v1342 = vadd.f32 %v1158, %v1341
      %v1343 = vpop.f32.mrb[0].mxu0
      %1344 = vmatprep.mubr.f32.mxu0 0.0
      %1345 = vmatmul.mubr.f32.gmra.mrb[0].mxu0 %v1129
      %v1346 = vpop.f32.mrb[0].mxu0
      %v1347 = vadd.f32 %v1158, %v1346
      %v1348 = vpop.f32.mrb[0].mxu0
      %1349 = vmatprep.mubr.f32.mxu0 0.0
      %1350 = vmatmul.mubr.f32.gmra.mrb[0].mxu0 %v1130
      %v1351 = vpop.f32.mrb[0].mxu0
      %v1352 = vadd.f32 %v1158, %v1351
      %v1353 = vpop.f32.mrb[0].mxu0
      %1354 = vmatprep.mubr.f32.mxu0 0.0
      %1355 = vmatmul.mubr.f32.gmra.mrb[0].mxu0 %v1131
      %v1356 = vpop.f32.mrb[0].mxu0
      %v1357 = vadd.f32 %v1158, %v1356
      %v1358 = vpop.f32.mrb[0].mxu0
      %1359 = vmatprep.mubr.f32.mxu0 0.0
      %1360 = vmatmul.mubr.f32.gmra.mrb[0].mxu0 %v1132
      %v1361 = vpop.f32.mrb[0].mxu0
      %v1362 = vadd.f32 %v1158, %v1361
      %v1363 = vpop.f32.mrb[0].mxu0
      %1364 = vmatprep.mubr.f32.mxu0 0.0
      %1365 = vmatmul.mubr.f32.gmra.mrb[0].mxu0 %v1133
      %v1366 = vpop.f32.mrb[0].mxu0
      %v1367 = vadd.f32 %v1158, %v1366
      %v1368 = vpop.f32.mrb[0].mxu0
      %1369 = vmatprep.mubr.f32.mxu0 0.0
      %1370 = vmatmul.mubr.f32.gmra.mrb[0].mxu0 %v1134
      %v1371 = vpop.f32.mrb[0].mxu0
      %v1372 = vadd.f32 %v1158, %v1371
      %v1373 = vpop.f32.mrb[0].mxu0
      %1374 = vmatprep.mubr.f32.mxu0 0.0
      %1375 = vmatmul.mubr.f32.gmra.mrb[0].mxu0 %v1135
      %v1376 = vpop.f32.mrb[0].mxu0
      %v1377 = vadd.f32 %v1158, %v1376
      %v1378 = vpop.f32.mrb[0].mxu0
      %1379 = vmatprep.mubr.f32.mxu0 0.0
      %1380 = vmatmul.mubr.f32.gmra.mrb[0].mxu0 %v1136
      %v1381 = vpop.f32.mrb[0].mxu0
      %v1382 = vadd.f32 %v1158, %v1381
      %v1383 = vpop.f32.mrb[0].mxu0
      %1384 = vdwg.mxu0
      %v1385 = vmax.f32 %v1227, 0.0
      %v1386 = vmax.f32 %v1232, 0.0
      %v1387 = vmax.f32 %v1237, 0.0
      %v1388 = vmax.f32 %v1242, 0.0
      %v1389 = vmax.f32 %v1247, 0.0
      %v1390 = vmax.f32 %v1252, 0.0
      %v1391 = vmax.f32 %v1257, 0.0
      %v1392 = vmax.f32 %v1262, 0.0
      %v1393 = vmax.f32 %v1267, 0.0
      %v1394 = vmax.f32 %v1272, 0.0
      %v1395 = vmax.f32 %v1277, 0.0
      %v1396 = vmax.f32 %v1282, 0.0
      %v1397 = vmax.f32 %v1287, 0.0
      %v1398 = vmax.f32 %v1292, 0.0
      %v1399 = vmax.f32 %v1297, 0.0
      %v1400 = vmax.f32 %v1302, 0.0
      %v1401 = vmax.f32 %v1307, 0.0
      %v1402 = vmax.f32 %v1312, 0.0
      %v1403 = vmax.f32 %v1317, 0.0
      %v1404 = vmax.f32 %v1322, 0.0
      %v1405 = vmax.f32 %v1327, 0.0
      %v1406 = vmax.f32 %v1332, 0.0
      %v1407 = vmax.f32 %v1337, 0.0
      %v1408 = vmax.f32 %v1342, 0.0
      %v1409 = vmax.f32 %v1347, 0.0
      %v1410 = vmax.f32 %v1352, 0.0
      %v1411 = vmax.f32 %v1357, 0.0
      %v1412 = vmax.f32 %v1362, 0.0
      %v1413 = vmax.f32 %v1367, 0.0
      %v1414 = vmax.f32 %v1372, 0.0
      %v1415 = vmax.f32 %v1377, 0.0
      %v1416 = vmax.f32 %v1382, 0.0
      %v1417 = vld [vmem:[%s7] sm:$0xff]
      %v1418 = vld [vmem:[%s7 + $0x8] sm:$0xff]
      %v1419 = vld [vmem:[%s7 + $0x10] sm:$0xff]
      %v1420 = vld [vmem:[%s7 + $0x18] sm:$0xff]
      %v1421 = vld [vmem:[%s8] sm:$0x1]
      %v1423 = vlaneseq
      %v1424 = vshrl.u32 %v1423, 7
      %v1425 = vsub.s32 0, %v1424
      %v1426 = vrot.slane %v1421, %v1425
      %v1429 = vsel %vm783, %v1385, 0
      %v1432 = vsel %vm783, %v1386, 0
      %v1435 = vsel %vm783, %v1387, 0
      %v1438 = vsel %vm783, %v1388, 0
      %v1441 = vsel %vm783, %v1389, 0
      %v1444 = vsel %vm783, %v1390, 0
      %v1447 = vsel %vm783, %v1391, 0
      %v1450 = vsel %vm783, %v1392, 0
      %v1453 = vsel %vm783, %v1393, 0
      %v1456 = vsel %vm783, %v1394, 0
      %v1459 = vsel %vm783, %v1395, 0
      %v1462 = vsel %vm783, %v1396, 0
      %v1465 = vsel %vm783, %v1397, 0
      %v1468 = vsel %vm783, %v1398, 0
      %v1471 = vsel %vm783, %v1399, 0
      %v1474 = vsel %vm783, %v1400, 0
      %v1477 = vsel %vm783, %v1401, 0
      %v1480 = vsel %vm783, %v1402, 0
      %v1483 = vsel %vm783, %v1403, 0
      %v1486 = vsel %vm783, %v1404, 0
      %v1489 = vsel %vm783, %v1405, 0
      %v1492 = vsel %vm783, %v1406, 0
      %v1495 = vsel %vm783, %v1407, 0
      %v1498 = vsel %vm783, %v1408, 0
      %v1501 = vsel %vm783, %v1409, 0
      %v1504 = vsel %vm783, %v1410, 0
      %v1507 = vsel %vm783, %v1411, 0
      %v1510 = vsel %vm783, %v1412, 0
      %v1513 = vsel %vm783, %v1413, 0
      %v1516 = vsel %vm783, %v1414, 0
      %v1519 = vsel %vm783, %v1415, 0
      %v1522 = vsel %vm783, %v1416, 0
      %1524 = vmatprep.subr.mxu0 0.0
      %1525 = vmatpush1.msra.mxu0 %v1417
      %1526 = vmatprep.subr.mxu0 0.0
      %1527 = vmatpush1.msra.mxu0 %v1418
      %1528 = vmatprep.subr.mxu0 0.0
      %1529 = vmatpush1.msra.mxu0 %v1419
      %1530 = vmatprep.subr.mxu0 0.0
      %1531 = vmatpush1.msra.mxu0 %v1420
      %1532 = vmatprep.subr.mxu0 0.0
      %1533 = vmatpush1.msra.mxu0 0.0
      %1534 = vmatprep.subr.mxu0 0.0
      %1535 = vmatpush1.msra.mxu0 0.0
      %1536 = vmatprep.subr.mxu0 0.0
      %1537 = vmatpush1.msra.mxu0 0.0
      %1538 = vmatprep.subr.mxu0 0.0
      %1539 = vmatpush1.msra.mxu0 0.0
      %1540 = vmatprep.subr.mxu0 0.0
      %1541 = vmatpush1.msra.mxu0 0.0
      %1542 = vmatprep.subr.mxu0 0.0
      %1543 = vmatpush1.msra.mxu0 0.0
      %1544 = vmatprep.subr.mxu0 0.0
      %1545 = vmatpush1.msra.mxu0 0.0
      %1546 = vmatprep.subr.mxu0 0.0
      %1547 = vmatpush1.msra.mxu0 0.0
      %1548 = vmatprep.subr.mxu0 0.0
      %1549 = vmatpush1.msra.mxu0 0.0
      %1550 = vmatprep.subr.mxu0 0.0
      %1551 = vmatpush1.msra.mxu0 0.0
      %1552 = vmatprep.subr.mxu0 0.0
      %1553 = vmatpush1.msra.mxu0 0.0
      %1554 = vmatprep.subr.mxu0 0.0
      %1555 = vmatpush1.msra.mxu0 0.0
      %1556 = vmatprep.subr.mxu0 0.0
      %1557 = vmatpush1.msra.mxu0 0.0
      %1558 = vmatprep.subr.mxu0 0.0
      %1559 = vmatpush1.msra.mxu0 0.0
      %1560 = vmatprep.subr.mxu0 0.0
      %1561 = vmatpush1.msra.mxu0 0.0
      %1562 = vmatprep.subr.mxu0 0.0
      %1563 = vmatpush1.msra.mxu0 0.0
      %1564 = vmatprep.subr.mxu0 0.0
      %1565 = vmatpush1.msra.mxu0 0.0
      %1566 = vmatprep.subr.mxu0 0.0
      %1567 = vmatpush1.msra.mxu0 0.0
      %1568 = vmatprep.subr.mxu0 0.0
      %1569 = vmatpush1.msra.mxu0 0.0
      %1570 = vmatprep.subr.mxu0 0.0
      %1571 = vmatpush1.msra.mxu0 0.0
      %1572 = vmatprep.subr.mxu0 0.0
      %1573 = vmatpush1.msra.mxu0 0.0
      %1574 = vmatprep.subr.mxu0 0.0
      %1575 = vmatpush1.msra.mxu0 0.0
      %1576 = vmatprep.subr.mxu0 0.0
      %1577 = vmatpush1.msra.mxu0 0.0
      %1578 = vmatprep.subr.mxu0 0.0
      %1579 = vmatpush1.msra.mxu0 0.0
      %1580 = vmatprep.subr.mxu0 0.0
      %1581 = vmatpush1.msra.mxu0 0.0
      %1582 = vmatprep.subr.mxu0 0.0
      %1583 = vmatpush1.msra.mxu0 0.0
      %1584 = vmatprep.subr.mxu0 0.0
      %1585 = vmatpush1.msra.mxu0 0.0
      %1586 = vmatprep.subr.mxu0 0.0
      %1587 = vmatpush1.msra.mxu0 0.0
      %1588 = vmatprep.mubr.f32.mxu0 0.0
      %1589 = vmatmul.mubr.f32.gmra.mrb[0].mxu0 %v1429
      %v1590 = vpop.f32.mrb[0].mxu0
      %v1591 = vadd.f32 %v1426, %v1590
      %v1592 = vpop.f32.mrb[0].mxu0
      %1593 = vmatprep.mubr.f32.mxu0 0.0
      %1594 = vmatmul.mubr.f32.gmra.mrb[0].mxu0 %v1432
      %v1595 = vpop.f32.mrb[0].mxu0
      %v1596 = vadd.f32 %v1426, %v1595
      %v1597 = vpop.f32.mrb[0].mxu0
      %1598 = vmatprep.mubr.f32.mxu0 0.0
      %1599 = vmatmul.mubr.f32.gmra.mrb[0].mxu0 %v1435
      %v1600 = vpop.f32.mrb[0].mxu0
      %v1601 = vadd.f32 %v1426, %v1600
      %v1602 = vpop.f32.mrb[0].mxu0
      %1603 = vmatprep.mubr.f32.mxu0 0.0
      %1604 = vmatmul.mubr.f32.gmra.mrb[0].mxu0 %v1438
      %v1605 = vpop.f32.mrb[0].mxu0
      %v1606 = vadd.f32 %v1426, %v1605
      %v1607 = vpop.f32.mrb[0].mxu0
      %1608 = vmatprep.mubr.f32.mxu0 0.0
      %1609 = vmatmul.mubr.f32.gmra.mrb[0].mxu0 %v1441
      %v1610 = vpop.f32.mrb[0].mxu0
      %v1611 = vadd.f32 %v1426, %v1610
      %v1612 = vpop.f32.mrb[0].mxu0
      %1613 = vmatprep.mubr.f32.mxu0 0.0
      %1614 = vmatmul.mubr.f32.gmra.mrb[0].mxu0 %v1444
      %v1615 = vpop.f32.mrb[0].mxu0
      %v1616 = vadd.f32 %v1426, %v1615
      %v1617 = vpop.f32.mrb[0].mxu0
      %1618 = vmatprep.mubr.f32.mxu0 0.0
      %1619 = vmatmul.mubr.f32.gmra.mrb[0].mxu0 %v1447
      %v1620 = vpop.f32.mrb[0].mxu0
      %v1621 = vadd.f32 %v1426, %v1620
      %v1622 = vpop.f32.mrb[0].mxu0
      %1623 = vmatprep.mubr.f32.mxu0 0.0
      %1624 = vmatmul.mubr.f32.gmra.mrb[0].mxu0 %v1450
      %v1625 = vpop.f32.mrb[0].mxu0
      %v1626 = vadd.f32 %v1426, %v1625
      %v1627 = vpop.f32.mrb[0].mxu0
      %1628 = vmatprep.mubr.f32.mxu0 0.0
      %1629 = vmatmul.mubr.f32.gmra.mrb[0].mxu0 %v1453
      %v1630 = vpop.f32.mrb[0].mxu0
      %v1631 = vadd.f32 %v1426, %v1630
      %v1632 = vpop.f32.mrb[0].mxu0
      %1633 = vmatprep.mubr.f32.mxu0 0.0
      %1634 = vmatmul.mubr.f32.gmra.mrb[0].mxu0 %v1456
      %v1635 = vpop.f32.mrb[0].mxu0
      %v1636 = vadd.f32 %v1426, %v1635
      %v1637 = vpop.f32.mrb[0].mxu0
      %1638 = vmatprep.mubr.f32.mxu0 0.0
      %1639 = vmatmul.mubr.f32.gmra.mrb[0].mxu0 %v1459
      %v1640 = vpop.f32.mrb[0].mxu0
      %v1641 = vadd.f32 %v1426, %v1640
      %v1642 = vpop.f32.mrb[0].mxu0
      %1643 = vmatprep.mubr.f32.mxu0 0.0
      %1644 = vmatmul.mubr.f32.gmra.mrb[0].mxu0 %v1462
      %v1645 = vpop.f32.mrb[0].mxu0
      %v1646 = vadd.f32 %v1426, %v1645
      %v1647 = vpop.f32.mrb[0].mxu0
      %1648 = vmatprep.mubr.f32.mxu0 0.0
      %1649 = vmatmul.mubr.f32.gmra.mrb[0].mxu0 %v1465
      %v1650 = vpop.f32.mrb[0].mxu0
      %v1651 = vadd.f32 %v1426, %v1650
      %v1652 = vpop.f32.mrb[0].mxu0
      %1653 = vmatprep.mubr.f32.mxu0 0.0
      %1654 = vmatmul.mubr.f32.gmra.mrb[0].mxu0 %v1468
      %v1655 = vpop.f32.mrb[0].mxu0
      %v1656 = vadd.f32 %v1426, %v1655
      %v1657 = vpop.f32.mrb[0].mxu0
      %1658 = vmatprep.mubr.f32.mxu0 0.0
      %1659 = vmatmul.mubr.f32.gmra.mrb[0].mxu0 %v1471
      %v1660 = vpop.f32.mrb[0].mxu0
      %v1661 = vadd.f32 %v1426, %v1660
      %v1662 = vpop.f32.mrb[0].mxu0
      %1663 = vmatprep.mubr.f32.mxu0 0.0
      %1664 = vmatmul.mubr.f32.gmra.mrb[0].mxu0 %v1474
      %v1665 = vpop.f32.mrb[0].mxu0
      %v1666 = vadd.f32 %v1426, %v1665
      %v1667 = vpop.f32.mrb[0].mxu0
      %1668 = vmatprep.mubr.f32.mxu0 0.0
      %1669 = vmatmul.mubr.f32.gmra.mrb[0].mxu0 %v1477
      %v1670 = vpop.f32.mrb[0].mxu0
      %v1671 = vadd.f32 %v1426, %v1670
      %v1672 = vpop.f32.mrb[0].mxu0
      %1673 = vmatprep.mubr.f32.mxu0 0.0
      %1674 = vmatmul.mubr.f32.gmra.mrb[0].mxu0 %v1480
      %v1675 = vpop.f32.mrb[0].mxu0
      %v1676 = vadd.f32 %v1426, %v1675
      %v1677 = vpop.f32.mrb[0].mxu0
      %1678 = vmatprep.mubr.f32.mxu0 0.0
      %1679 = vmatmul.mubr.f32.gmra.mrb[0].mxu0 %v1483
      %v1680 = vpop.f32.mrb[0].mxu0
      %v1681 = vadd.f32 %v1426, %v1680
      %v1682 = vpop.f32.mrb[0].mxu0
      %1683 = vmatprep.mubr.f32.mxu0 0.0
      %1684 = vmatmul.mubr.f32.gmra.mrb[0].mxu0 %v1486
      %v1685 = vpop.f32.mrb[0].mxu0
      %v1686 = vadd.f32 %v1426, %v1685
      %v1687 = vpop.f32.mrb[0].mxu0
      %1688 = vmatprep.mubr.f32.mxu0 0.0
      %1689 = vmatmul.mubr.f32.gmra.mrb[0].mxu0 %v1489
      %v1690 = vpop.f32.mrb[0].mxu0
      %v1691 = vadd.f32 %v1426, %v1690
      %v1692 = vpop.f32.mrb[0].mxu0
      %1693 = vmatprep.mubr.f32.mxu0 0.0
      %1694 = vmatmul.mubr.f32.gmra.mrb[0].mxu0 %v1492
      %v1695 = vpop.f32.mrb[0].mxu0
      %v1696 = vadd.f32 %v1426, %v1695
      %v1697 = vpop.f32.mrb[0].mxu0
      %1698 = vmatprep.mubr.f32.mxu0 0.0
      %1699 = vmatmul.mubr.f32.gmra.mrb[0].mxu0 %v1495
      %v1700 = vpop.f32.mrb[0].mxu0
      %v1701 = vadd.f32 %v1426, %v1700
      %v1702 = vpop.f32.mrb[0].mxu0
      %1703 = vmatprep.mubr.f32.mxu0 0.0
      %1704 = vmatmul.mubr.f32.gmra.mrb[0].mxu0 %v1498
      %v1705 = vpop.f32.mrb[0].mxu0
      %v1706 = vadd.f32 %v1426, %v1705
      %v1707 = vpop.f32.mrb[0].mxu0
      %1708 = vmatprep.mubr.f32.mxu0 0.0
      %1709 = vmatmul.mubr.f32.gmra.mrb[0].mxu0 %v1501
      %v1710 = vpop.f32.mrb[0].mxu0
      %v1711 = vadd.f32 %v1426, %v1710
      %v1712 = vpop.f32.mrb[0].mxu0
      %1713 = vmatprep.mubr.f32.mxu0 0.0
      %1714 = vmatmul.mubr.f32.gmra.mrb[0].mxu0 %v1504
      %v1715 = vpop.f32.mrb[0].mxu0
      %v1716 = vadd.f32 %v1426, %v1715
      %v1717 = vpop.f32.mrb[0].mxu0
      %1718 = vmatprep.mubr.f32.mxu0 0.0
      %1719 = vmatmul.mubr.f32.gmra.mrb[0].mxu0 %v1507
      %v1720 = vpop.f32.mrb[0].mxu0
      %v1721 = vadd.f32 %v1426, %v1720
      %v1722 = vpop.f32.mrb[0].mxu0
      %1723 = vmatprep.mubr.f32.mxu0 0.0
      %1724 = vmatmul.mubr.f32.gmra.mrb[0].mxu0 %v1510
      %v1725 = vpop.f32.mrb[0].mxu0
      %v1726 = vadd.f32 %v1426, %v1725
      %v1727 = vpop.f32.mrb[0].mxu0
      %1728 = vmatprep.mubr.f32.mxu0 0.0
      %1729 = vmatmul.mubr.f32.gmra.mrb[0].mxu0 %v1513
      %v1730 = vpop.f32.mrb[0].mxu0
      %v1731 = vadd.f32 %v1426, %v1730
      %v1732 = vpop.f32.mrb[0].mxu0
      %1733 = vmatprep.mubr.f32.mxu0 0.0
      %1734 = vmatmul.mubr.f32.gmra.mrb[0].mxu0 %v1516
      %v1735 = vpop.f32.mrb[0].mxu0
      %v1736 = vadd.f32 %v1426, %v1735
      %v1737 = vpop.f32.mrb[0].mxu0
      %1738 = vmatprep.mubr.f32.mxu0 0.0
      %1739 = vmatmul.mubr.f32.gmra.mrb[0].mxu0 %v1519
      %v1740 = vpop.f32.mrb[0].mxu0
      %v1741 = vadd.f32 %v1426, %v1740
      %v1742 = vpop.f32.mrb[0].mxu0
      %1743 = vmatprep.mubr.f32.mxu0 0.0
      %1744 = vmatmul.mubr.f32.gmra.mrb[0].mxu0 %v1522
      %v1745 = vpop.f32.mrb[0].mxu0
      %v1746 = vadd.f32 %v1426, %v1745
      %v1747 = vpop.f32.mrb[0].mxu0
      %1748 = vdwg.mxu0
      %v1749 = vmul.f32 %v1591, 1.442695
      %v1750 = vpow.pop %v1749
      %v1751 = vmul.f32 %v1596, 1.442695
      %v1752 = vpow.pop %v1751
      %v1753 = vmul.f32 %v1601, 1.442695
      %v1754 = vpow.pop %v1753
      %v1755 = vmul.f32 %v1606, 1.442695
      %v1756 = vpow.pop %v1755
      %v1757 = vmul.f32 %v1611, 1.442695
      %v1758 = vpow.pop %v1757
      %v1759 = vmul.f32 %v1616, 1.442695
      %v1760 = vpow.pop %v1759
      %v1761 = vmul.f32 %v1621, 1.442695
      %v1762 = vpow.pop %v1761
      %v1763 = vmul.f32 %v1626, 1.442695
      %v1764 = vpow.pop %v1763
      %v1765 = vmul.f32 %v1631, 1.442695
      %v1766 = vpow.pop %v1765
      %v1767 = vmul.f32 %v1636, 1.442695
      %v1768 = vpow.pop %v1767
      %v1769 = vmul.f32 %v1641, 1.442695
      %v1770 = vpow.pop %v1769
      %v1771 = vmul.f32 %v1646, 1.442695
      %v1772 = vpow.pop %v1771
      %v1773 = vmul.f32 %v1651, 1.442695
      %v1774 = vpow.pop %v1773
      %v1775 = vmul.f32 %v1656, 1.442695
      %v1776 = vpow.pop %v1775
      %v1777 = vmul.f32 %v1661, 1.442695
      %v1778 = vpow.pop %v1777
      %v1779 = vmul.f32 %v1666, 1.442695
      %v1780 = vpow.pop %v1779
      %v1781 = vmul.f32 %v1671, 1.442695
      %v1782 = vpow.pop %v1781
      %v1783 = vmul.f32 %v1676, 1.442695
      %v1784 = vpow.pop %v1783
      %v1785 = vmul.f32 %v1681, 1.442695
      %v1786 = vpow.pop %v1785
      %v1787 = vmul.f32 %v1686, 1.442695
      %v1788 = vpow.pop %v1787
      %v1789 = vmul.f32 %v1691, 1.442695
      %v1790 = vpow.pop %v1789
      %v1791 = vmul.f32 %v1696, 1.442695
      %v1792 = vpow.pop %v1791
      %v1793 = vmul.f32 %v1701, 1.442695
      %v1794 = vpow.pop %v1793
      %v1795 = vmul.f32 %v1706, 1.442695
      %v1796 = vpow.pop %v1795
      %v1797 = vmul.f32 %v1711, 1.442695
      %v1798 = vpow.pop %v1797
      %v1799 = vmul.f32 %v1716, 1.442695
      %v1800 = vpow.pop %v1799
      %v1801 = vmul.f32 %v1721, 1.442695
      %v1802 = vpow.pop %v1801
      %v1803 = vmul.f32 %v1726, 1.442695
      %v1804 = vpow.pop %v1803
      %v1805 = vmul.f32 %v1731, 1.442695
      %v1806 = vpow.pop %v1805
      %v1807 = vmul.f32 %v1736, 1.442695
      %v1808 = vpow.pop %v1807
      %v1809 = vmul.f32 %v1741, 1.442695
      %v1810 = vpow.pop %v1809
      %v1811 = vmul.f32 %v1746, 1.442695
      %v1812 = vpow.pop %v1811
      %1813 = vst.msk [vmem:[%s369] sm:$0xff] %vm418, %v1750
      %1814 = vst.msk [vmem:[%s369 + $0x8] sm:$0xff] %vm418, %v1752
      %1815 = vst.msk [vmem:[%s369 + $0x10] sm:$0xff] %vm418, %v1754
      %1816 = vst.msk [vmem:[%s369 + $0x18] sm:$0xff] %vm418, %v1756
      %1817 = vst.msk [vmem:[%s369 + $0x20] sm:$0xff] %vm418, %v1758
      %1818 = vst.msk [vmem:[%s369 + $0x28] sm:$0xff] %vm418, %v1760
      %1819 = vst.msk [vmem:[%s369 + $0x30] sm:$0xff] %vm418, %v1762
      %1820 = vst.msk [vmem:[%s369 + $0x38] sm:$0xff] %vm418, %v1764
      %1821 = vst.msk [vmem:[%s369 + $0x40] sm:$0xff] %vm418, %v1766
      %1822 = vst.msk [vmem:[%s369 + $0x48] sm:$0xff] %vm418, %v1768
      %1823 = vst.msk [vmem:[%s369 + $0x50] sm:$0xff] %vm418, %v1770
      %1824 = vst.msk [vmem:[%s369 + $0x58] sm:$0xff] %vm418, %v1772
      %1825 = vst.msk [vmem:[%s369 + $0x60] sm:$0xff] %vm418, %v1774
      %1826 = vst.msk [vmem:[%s369 + $0x68] sm:$0xff] %vm418, %v1776
      %1827 = vst.msk [vmem:[%s369 + $0x70] sm:$0xff] %vm418, %v1778
      %1828 = vst.msk [vmem:[%s369 + $0x78] sm:$0xff] %vm418, %v1780
      %1829 = vst.msk [vmem:[%s369 + $0x80] sm:$0xff] %vm418, %v1782
      %1830 = vst.msk [vmem:[%s369 + $0x88] sm:$0xff] %vm418, %v1784
      %1831 = vst.msk [vmem:[%s369 + $0x90] sm:$0xff] %vm418, %v1786
      %1832 = vst.msk [vmem:[%s369 + $0x98] sm:$0xff] %vm418, %v1788
      %1833 = vst.msk [vmem:[%s369 + $0xa0] sm:$0xff] %vm418, %v1790
      %1834 = vst.msk [vmem:[%s369 + $0xa8] sm:$0xff] %vm418, %v1792
      %1835 = vst.msk [vmem:[%s369 + $0xb0] sm:$0xff] %vm418, %v1794
      %1836 = vst.msk [vmem:[%s369 + $0xb8] sm:$0xff] %vm418, %v1796
      %1837 = vst.msk [vmem:[%s369 + $0xc0] sm:$0xff] %vm418, %v1798
      %1838 = vst.msk [vmem:[%s369 + $0xc8] sm:$0xff] %vm418, %v1800
      %1839 = vst.msk [vmem:[%s369 + $0xd0] sm:$0xff] %vm418, %v1802
      %1840 = vst.msk [vmem:[%s369 + $0xd8] sm:$0xff] %vm418, %v1804
      %1841 = vst.msk [vmem:[%s369 + $0xe0] sm:$0xff] %vm418, %v1806
      %1842 = vst.msk [vmem:[%s369 + $0xe8] sm:$0xff] %vm418, %v1808
      %1843 = vst.msk [vmem:[%s369 + $0xf0] sm:$0xff] %vm418, %v1810
      %1844 = vst.msk [vmem:[%s369 + $0xf8] sm:$0xff] %vm418, %v1812
      %vm1845 = vcmask 64512
      %1846 = vst.msk [vmem:[%s375] sm:$0xff] %vm1845, %v1105
      %1847 = vst.msk [vmem:[%s375 + $0x8] sm:$0xff] %vm1845, %v1106
      %1848 = vst.msk [vmem:[%s375 + $0x10] sm:$0xff] %vm1845, %v1107
      %1849 = vst.msk [vmem:[%s375 + $0x18] sm:$0xff] %vm1845, %v1108
      %1850 = vst.msk [vmem:[%s375 + $0x20] sm:$0xff] %vm1845, %v1109
      %1851 = vst.msk [vmem:[%s375 + $0x28] sm:$0xff] %vm1845, %v1110
      %1852 = vst.msk [vmem:[%s375 + $0x30] sm:$0xff] %vm1845, %v1111
      %1853 = vst.msk [vmem:[%s375 + $0x38] sm:$0xff] %vm1845, %v1112
      %1854 = vst.msk [vmem:[%s375 + $0x40] sm:$0xff] %vm1845, %v1113
      %1855 = vst.msk [vmem:[%s375 + $0x48] sm:$0xff] %vm1845, %v1114
      %1856 = vst.msk [vmem:[%s375 + $0x50] sm:$0xff] %vm1845, %v1115
      %1857 = vst.msk [vmem:[%s375 + $0x58] sm:$0xff] %vm1845, %v1116
      %1858 = vst.msk [vmem:[%s375 + $0x60] sm:$0xff] %vm1845, %v1117
      %1859 = vst.msk [vmem:[%s375 + $0x68] sm:$0xff] %vm1845, %v1118
      %1860 = vst.msk [vmem:[%s375 + $0x70] sm:$0xff] %vm1845, %v1119
      %1861 = vst.msk [vmem:[%s375 + $0x78] sm:$0xff] %vm1845, %v1120
      %1862 = vst.msk [vmem:[%s375 + $0x80] sm:$0xff] %vm1845, %v1121
      %1863 = vst.msk [vmem:[%s375 + $0x88] sm:$0xff] %vm1845, %v1122
      %1864 = vst.msk [vmem:[%s375 + $0x90] sm:$0xff] %vm1845, %v1123
      %1865 = vst.msk [vmem:[%s375 + $0x98] sm:$0xff] %vm1845, %v1124
      %1866 = vst.msk [vmem:[%s375 + $0xa0] sm:$0xff] %vm1845, %v1125
      %1867 = vst.msk [vmem:[%s375 + $0xa8] sm:$0xff] %vm1845, %v1126
      %1868 = vst.msk [vmem:[%s375 + $0xb0] sm:$0xff] %vm1845, %v1127
      %1869 = vst.msk [vmem:[%s375 + $0xb8] sm:$0xff] %vm1845, %v1128
      %1870 = vst.msk [vmem:[%s375 + $0xc0] sm:$0xff] %vm1845, %v1129
      %1871 = vst.msk [vmem:[%s375 + $0xc8] sm:$0xff] %vm1845, %v1130
      %1872 = vst.msk [vmem:[%s375 + $0xd0] sm:$0xff] %vm1845, %v1131
      %1873 = vst.msk [vmem:[%s375 + $0xd8] sm:$0xff] %vm1845, %v1132
      %1874 = vst.msk [vmem:[%s375 + $0xe0] sm:$0xff] %vm1845, %v1133
      %1875 = vst.msk [vmem:[%s375 + $0xe8] sm:$0xff] %vm1845, %v1134
      %1876 = vst.msk [vmem:[%s375 + $0xf0] sm:$0xff] %vm1845, %v1135
      %1877 = vst.msk [vmem:[%s375 + $0xf8] sm:$0xff] %vm1845, %v1136
      %s1878 = smul.u32 32, %s22
      %p1879 = scmp.lt.s32.totalorder %s1878, 63
      %s1880 = scalar_select %p1879, %s1878, 63
      %s1881 = smul.addr %s1880, 8
      %s1882 = scalar_lea.vmem %s9, %s1881
      %s1883 = smul.u32 32, %s22
      %p1884 = scmp.lt.s32.totalorder %s1883, 63
      %s1885 = scalar_select %p1884, %s1883, 63
      %s1886 = smul.addr %s1885, 8
      %s1887 = scalar_lea.vmem %s10, %s1886
      // Predicated region
      $region57: #{tpu_custom_call.1} parent=55 // pred_check
        %p1888 = pneg %p234
      $region58: #{tpu_custom_call.1} parent=55 // pred_check_branch
        %1890 = sbr.rel (%p1888) target = $region60
      $region59: #{tpu_custom_call.1} parent=55 // pred_region
        %s1891 = smul.u32 32, %s22
      $region60: #{tpu_custom_call.1} parent=55 // pred_fallthru
        _
      // Predicated region
      $region61: #{tpu_custom_call.1} parent=55 // pred_check
        %p1892 = pneg %p260
      $region62: #{tpu_custom_call.1} parent=55 // pred_check_branch
        %1894 = sbr.rel (%p1892) target = $region64
      $region63: #{tpu_custom_call.1} parent=55 // pred_region
        %s1895 = smul.u32 32, %s22
      $region64: #{tpu_custom_call.1} parent=55 // pred_fallthru
        _
    $region56: #{tpu_custom_call.1} parent=5 // pred_fallthru
      _
    %p1896 = scmp.le.s32.totalorder 2, %s17
    // Predicated region
    $region65: #{tpu_custom_call.1} parent=5 // pred_check
      %p1897 = pneg %p1896
    $region66: #{tpu_custom_call.1} parent=5 // pred_check_branch
      %1899 = sbr.rel (%p1897) target = $region68
    $region67: #{tpu_custom_call.1} parent=5 // pred_region
      %s1900 = ssub.s32 %s17, 2
      // Predicated region
      $region69: #{tpu_custom_call.1} parent=67 // pred_check
        %p1901 = pneg %p240
      $region70: #{tpu_custom_call.1} parent=67 // pred_check_branch
        %1903 = sbr.rel (%p1901) target = $region72
      $region71: #{tpu_custom_call.1} parent=67 // pred_region
        %s1904 = smul.u32 32, %s23
        %p1905 = scmp.lt.s32.totalorder %s1904, 63
        %s1906 = scalar_select %p1905, %s1904, 63
        %s1907 = smul.addr %s1906, 8
        %s1908 = scalar_lea.vmem %s9, %s1907
      $region72: #{tpu_custom_call.1} parent=67 // pred_fallthru
        _
      // Predicated region
      $region73: #{tpu_custom_call.1} parent=67 // pred_check
        %p1909 = pneg %p266
      $region74: #{tpu_custom_call.1} parent=67 // pred_check_branch
        %1911 = sbr.rel (%p1909) target = $region76
      $region75: #{tpu_custom_call.1} parent=67 // pred_region
        %s1912 = smul.u32 32, %s23
        %p1913 = scmp.lt.s32.totalorder %s1912, 63
        %s1914 = scalar_select %p1913, %s1912, 63
        %s1915 = smul.addr %s1914, 8
        %s1916 = scalar_lea.vmem %s10, %s1915
      $region76: #{tpu_custom_call.1} parent=67 // pred_fallthru
        _
    $region68: #{tpu_custom_call.1} parent=5 // pred_fallthru
      _
  $region6: #{tpu_custom_call.1} parent=0 // loop_footer
    %s21 = sadd.s32 1, %s17
  $region7: #{tpu_custom_call.1} parent=0 // loop_footer_branch
    %16 = sbr.rel target = $region3
  $region8: #{tpu_custom_call.1} parent=0 // loop_exit
    _

</llo_original>
